<compile_context>
chip_gen: v7x
topology: tpu7x:2x2x1
jax: 0.10.0
libtpu: 0.0.40
codegen_flags: <defaults>
</compile_context>

<pallas_src>
import functools
import math

import jax
import jax.numpy as jnp
import numpy as np
from jax import lax
from jax.experimental import pallas as pl
from jax.experimental.pallas import tpu as pltpu


def _lane_group_reduce(v, group, op):
    """v: (B, W*group).  Returns (B, W*group) where lane w*group+c holds the
    op-reduction over all W lane groups of channel c (log2(W) XLU lane rolls)."""
    wc = v.shape[-1]
    r = v
    shift = group
    while shift < wc:
        r = op(r, pltpu.roll(r, shift, axis=v.ndim - 1))
        shift *= 2
    return r


def basic_block_kernel(x_ref, w1_ref, w2_ref, mask_ref, par_ref, o_ref, *, C):
    B, H, WC = x_ref.shape
    M = B * H
    W = WC // C

    x3 = x_ref[...]                          # (B, H, WC) f32, lane-dense
    x = x3.reshape(M, WC)                    # batch-flattened for the MXU

    # Host-precomputed boundary-row masks: zero the dy-shifted contributions at
    # image top/bottom rows (also prevents roll wrap across image boundaries).
    mask_top = mask_ref[0]                   # (M, WC): 0 where row % H == 0
    mask_bot = mask_ref[1]                   # (M, WC): 0 where row % H == H-1

    par = par_ref[...]                       # (16, WC) parameter slab
    bn1b = par[0:1]
    bn2b = par[1:2]

    def conv3x3(inp, w_ref):
        # One wide (M,128)x(128,384) bf16 matmul (f32 accum) produces the three
        # dy taps (dx taps + width zero-padding + BN scale folded into the
        # packed weights on the host); the dy = +-1 shifts are sublane rolls
        # (XLU) gated by the boundary masks (VPU).
        p = jnp.dot(inp.astype(jnp.bfloat16), w_ref[...],
                    preferred_element_type=jnp.float32)        # (M, 3*WC)
        p0 = p[:, 0 * WC:1 * WC]
        p1 = p[:, 1 * WC:2 * WC]
        p2 = p[:, 2 * WC:3 * WC]
        down = pltpu.roll(p0, 1, axis=0) * mask_top             # out[h] += P0[h-1]
        up = pltpu.roll(p2, M - 1, axis=0) * mask_bot           # out[h] += P2[h+1]
        return down + p1 + up

    # ---- conv1 -> bn1 -> relu, conv2 -> bn2 (scales folded, bias here) ----
    out1 = jnp.maximum(conv3x3(x, w1_ref) + bn1b, 0.0)          # (M, WC)
    out2 = conv3x3(out1, w2_ref) + bn2b                         # (M, WC)

    # ---- MSAPooling SE gate (lane-dense, vectorized over B images) ----
    ht = H // 2
    hb = H - ht
    o3 = out2.reshape(B, H, WC)
    top = o3[:, :ht, :]
    bot = o3[:, ht:, :]
    sum_top = jnp.sum(top, axis=1)                              # (B, WC)
    sum_bot = jnp.sum(bot, axis=1)
    max_top = jnp.max(top, axis=1)
    max_bot = jnp.max(bot, axis=1)

    gsum_top = _lane_group_reduce(sum_top, C, jnp.add)
    gsum_bot = _lane_group_reduce(sum_bot, C, jnp.add)
    gmax_top = _lane_group_reduce(max_top, C, jnp.maximum)
    gmax_bot = _lane_group_reduce(max_bot, C, jnp.maximum)

    mean_up = gsum_top * (1.0 / (ht * W))
    mean_bt = gsum_bot * (1.0 / (hb * W))
    mean_all = (gsum_top + gsum_bot) * (1.0 / (H * W))
    max_up = gmax_top
    max_all = jnp.maximum(gmax_top, gmax_bot)

    cM0, cM1, cM2 = par[2:3], par[3:4], par[4:5]
    cA0, cA1, cA2 = par[5:6], par[6:7], par[7:8]
    cS0, cS1, cS2 = par[8:9], par[9:10], par[10:11]
    cF0, cF1, cF2 = par[11:12], par[12:13], par[13:14]
    bses = par[14:15]
    bseb = par[15:16]

    # quirk: "max_bottom" in the original module is taken from the TOP half
    max_pre = max_all * cM0 + max_up * cM1 + max_up * cM2
    avg_pre = mean_all * cA0 + mean_up * cA1 + mean_bt * cA2
    # quirk: std_v in the original module is integrated from avg_t
    std_pre = mean_all * cS0 + mean_up * cS1 + mean_bt * cS2

    max_v = max_pre * bses + bseb
    avg_v = avg_pre * bses + bseb
    std_v = std_pre * bses + bseb
    fuse = (max_v * cF0 + avg_v * cF1 + std_v * cF2) * bses + bseb
    g = jax.nn.sigmoid(fuse)                                    # (B, WC)

    # ---- SE gating + residual add + relu (lane-dense store) ----
    o_ref[...] = jnp.maximum(o3 * g[:, None, :] + x3, 0.0).astype(o_ref.dtype)


def _pack_conv_weight(w_hwio, W, out_scale):
    """(3,3,Cin,Cout) HWIO + per-Cout BN scale -> (W*Cin, 3*W*Cout):
    per-dy block-tridiagonal packed weights (dx taps and width zero-padding
    folded in), BN scale folded into output columns, three dy blocks
    concatenated along the output axis (one wide matmul per conv)."""
    w_eff = w_hwio.astype(jnp.float32) * out_scale.reshape(1, 1, 1, -1)
    blocks = []
    for dy in range(3):
        wp = 0.0
        for dx in range(3):
            ox = dx - 1
            shift = jnp.eye(W, k=-ox, dtype=jnp.float32)   # S[w,v]=1 iff v==w-ox
            wp = wp + jnp.kron(shift, w_eff[dy, dx])
        blocks.append(wp)
    return jnp.concatenate(blocks, axis=1)


def _lane_pack(vec, W):
    """(..., C) per-channel params -> (..., W*C); lane w*C+c holds channel c."""
    return jnp.tile(vec, (1,) * (vec.ndim - 1) + (W,))


def _pick_b_tile(N, H, target_m=256):
    # Aim for MXU M ~ 256 (v6e/v7x; >=128 also fills v5e's 128-wide MXU) but
    # keep >= 2 grid steps when N allows so "parallel" shards over both v7x TCs.
    b = max(1, min(N, max(1, target_m // H)))
    while b > 1 and N // b < 2:
        b -= 1
    while N % b != 0:
        b -= 1
    return b


def basic_block_forward(x_nchw, params, b_tile=None):
    (w1_hwio, bn1s, bn1b, w2_hwio, bn2s, bn2b,
     cM, cA, cS, cF, bses, bseb) = params
    N, C, H, W = x_nchw.shape
    WC = W * C
    assert w1_hwio.shape == (3, 3, C, C) and w2_hwio.shape == (3, 3, C, C), \
        "residual add requires inplanes == planes (downsample=None, stride=1)"
    assert WC % 128 == 0, "lane-dense packing needs W*C to be a multiple of 128"
    assert (W & (W - 1)) == 0, "lane roll-tree reduction needs power-of-two W"

    if b_tile is None:
        b_tile = _pick_b_tile(N, H)
    assert N % b_tile == 0
    M = b_tile * H
    assert M % 8 == 0

    # Repack once per call; in a full model activations would stay packed.
    x_packed = jnp.transpose(x_nchw, (0, 2, 3, 1)).reshape(N, H, WC)

    # BN scales folded into the packed weights on the host (before bf16 cast).
    wp1 = _pack_conv_weight(w1_hwio, W, bn1s).astype(jnp.bfloat16)   # (WC, 3*WC)
    wp2 = _pack_conv_weight(w2_hwio, W, bn2s).astype(jnp.bfloat16)

    # Single (16, WC) parameter slab: one BlockSpec / one DMA for all the tiny
    # per-channel parameters.
    par = jnp.concatenate([
        _lane_pack(bn1b.reshape(1, C), W),
        _lane_pack(bn2b.reshape(1, C), W),
        _lane_pack(cM, W), _lane_pack(cA, W),
        _lane_pack(cS, W), _lane_pack(cF, W),
        _lane_pack(bses.reshape(1, C), W),
        _lane_pack(bseb.reshape(1, C), W)], axis=0).astype(jnp.float32)
    par_rows = par.shape[0]

    # Host-built boundary-row masks for the batch-flattened dy rolls.
    rows = np.arange(M) % H
    masks = jnp.asarray(np.stack([
        np.repeat((rows != 0).astype(np.float32)[:, None], WC, axis=1),
        np.repeat((rows != H - 1).astype(np.float32)[:, None], WC, axis=1)]))

    out_packed = pl.pallas_call(
        functools.partial(basic_block_kernel, C=C),
        out_shape=jax.ShapeDtypeStruct((N, H, WC), jnp.float32),
        grid_spec=pltpu.PrefetchScalarGridSpec(
            num_scalar_prefetch=0,
            grid=(N // b_tile,),
            in_specs=[
                pl.BlockSpec((b_tile, H, WC), lambda n: (n, 0, 0)),   # x
                pl.BlockSpec((WC, 3 * WC), lambda n: (0, 0)),         # conv1 packed W
                pl.BlockSpec((WC, 3 * WC), lambda n: (0, 0)),         # conv2 packed W
                pl.BlockSpec((2, M, WC), lambda n: (0, 0, 0)),        # boundary masks
                pl.BlockSpec((par_rows, WC), lambda n: (0, 0)),       # param slab
            ],
            out_specs=pl.BlockSpec((b_tile, H, WC), lambda n: (n, 0, 0)),
        ),
        compiler_params=pltpu.CompilerParams(
            dimension_semantics=("parallel",),
            # ~1 MiB/step today; budgeted against v7x's 64 MiB physical VMEM.
            vmem_limit_bytes=32 * 1024 * 1024,
        ),
    )(x_packed, wp1, wp2, masks, par)

    return jnp.transpose(out_packed.reshape(N, H, W, C), (0, 3, 1, 2))


def reference_forward(x_nchw, params):
    """Pure-JAX reference with identical semantics (BN scale folded into the
    bf16 conv weights, f32 accumulation and f32 elementwise)."""
    (w1_hwio, bn1s, bn1b, w2_hwio, bn2s, bn2b,
     cM, cA, cS, cF, bses, bseb) = params
    N, C, H, W = x_nchw.shape
    rb = lambda a: a.astype(jnp.bfloat16).astype(jnp.float32)
    x = jnp.transpose(x_nchw, (0, 2, 3, 1))
    dn = ('NHWC', 'HWIO', 'NHWC')
    w1_eff = w1_hwio * bn1s.reshape(1, 1, 1, C)
    w2_eff = w2_hwio * bn2s.reshape(1, 1, 1, C)
    out = lax.conv_general_dilated(rb(x), rb(w1_eff), (1, 1), 'SAME',
                                   dimension_numbers=dn,
                                   precision=lax.Precision.HIGHEST)
    out = jnp.maximum(out + bn1b.reshape(1, 1, 1, C), 0.0)
    out = lax.conv_general_dilated(rb(out), rb(w2_eff), (1, 1), 'SAME',
                                   dimension_numbers=dn,
                                   precision=lax.Precision.HIGHEST)
    out = out + bn2b.reshape(1, 1, 1, C)

    flat = out.reshape(N, H * W, C)
    top = out[:, :H // 2].reshape(N, -1, C)
    bot = out[:, H // 2:].reshape(N, -1, C)
    max_all = flat.max(1); max_up = top.max(1)
    mean_all = flat.mean(1); mean_up = top.mean(1); mean_bot = bot.mean(1)
    s = bses; b = bseb
    max_v = (max_all * cM[0] + max_up * cM[1] + max_up * cM[2]) * s + b
    avg_v = (mean_all * cA[0] + mean_up * cA[1] + mean_bot * cA[2]) * s + b
    std_v = (mean_all * cS[0] + mean_up * cS[1] + mean_bot * cS[2]) * s + b
    fuse = (max_v * cF[0] + avg_v * cF[1] + std_v * cF[2]) * s + b
    g = jax.nn.sigmoid(fuse)
    out = jnp.maximum(out * g[:, None, None, :] + x, 0.0)
    return jnp.transpose(out, (0, 3, 1, 2))


if __name__ == "__main__":
    N, C, H, W = 8, 8, 16, 16        # inplanes == planes == 8, stride=1; W*C = 128
    key = jax.random.PRNGKey(0)
    ks = jax.random.split(key, 12)

    x = jax.random.normal(ks[0], (N, C, H, W), jnp.float32)

    fan = C * 9
    w1_oihw = jax.random.normal(ks[1], (C, C, 3, 3), jnp.float32) / math.sqrt(fan)
    w2_oihw = jax.random.normal(ks[2], (C, C, 3, 3), jnp.float32) / math.sqrt(fan)
    # torch OIHW -> HWIO
    w1_hwio = jnp.transpose(w1_oihw, (2, 3, 1, 0))
    w2_hwio = jnp.transpose(w2_oihw, (2, 3, 1, 0))

    def fold_bn(gamma, beta, mean, var, eps=1e-5):
        scale = gamma / jnp.sqrt(var + eps)
        return scale, beta - mean * scale

    def bn_params(k):
        k1, k2, k3, k4 = jax.random.split(k, 4)
        gamma = 1.0 + 0.1 * jax.random.normal(k1, (C,), jnp.float32)
        beta = 0.1 * jax.random.normal(k2, (C,), jnp.float32)
        mean = 0.1 * jax.random.normal(k3, (C,), jnp.float32)
        var = jax.random.uniform(k4, (C,), jnp.float32, minval=0.5, maxval=1.5)
        return fold_bn(gamma, beta, mean, var)

    bn1s, bn1b = bn_params(ks[3])
    bn2s, bn2b = bn_params(ks[4])
    bses, bseb = bn_params(ks[5])    # shared BN inside MSAPooling

    # MSAPooling cfc params (module initializes them with 0/1 constants; random
    # but deterministic values here so the full compute path is exercised).
    cM = 0.1 * jax.random.normal(ks[6], (3, C), jnp.float32)
    cA = 1.0 + 0.1 * jax.random.normal(ks[7], (3, C), jnp.float32)
    cS = 0.1 * jax.random.normal(ks[8], (3, C), jnp.float32)
    cF = 0.1 * jax.random.normal(ks[9], (3, C), jnp.float32)

    params = (w1_hwio, bn1s, bn1b, w2_hwio, bn2s, bn2b,
              cM, cA, cS, cF, bses, bseb)

    out = basic_block_forward(x, params)
    out = jax.block_until_ready(out)

    ref = reference_forward(x, params)
    np.testing.assert_allclose(np.asarray(out), np.asarray(ref),
                               rtol=1e-3, atol=1e-3)
    print("KERNEL_OK")
</pallas_src>

<mosaic_0001>
module attributes {stable_mosaic.version = 11 : i64} {
  func.func @basic_block_kernel(%arg0: i32, %arg1: memref<4x16x128xf32, #tpu.memory_space<vmem>>, %arg2: memref<128x384xbf16, #tpu.memory_space<vmem>>, %arg3: memref<128x384xbf16, #tpu.memory_space<vmem>>, %arg4: memref<2x64x128xf32, #tpu.memory_space<vmem>>, %arg5: memref<16x128xf32, #tpu.memory_space<vmem>>, %arg6: memref<4x16x128xf32, #tpu.memory_space<vmem>>) attributes {dimension_semantics = [#tpu.dimension_semantics<parallel>], iteration_bounds = array<i64: 2>, scalar_prefetch = 0 : i64, scratch_operands = 0 : i64, tpu.core_type = #tpu.core_type<tc>, window_params = [{transform_indices = @transform_0, window_bounds = array<i64: 4, 16, 128>}, {pipeline_mode = #tpu.pipeline_mode<synchronous>, transform_indices = @transform_1, window_bounds = array<i64: 128, 384>}, {pipeline_mode = #tpu.pipeline_mode<synchronous>, transform_indices = @transform_2, window_bounds = array<i64: 128, 384>}, {pipeline_mode = #tpu.pipeline_mode<synchronous>, transform_indices = @transform_3, window_bounds = array<i64: 2, 64, 128>}, {pipeline_mode = #tpu.pipeline_mode<synchronous>, transform_indices = @transform_4, window_bounds = array<i64: 16, 128>}, {transform_indices = @transform_5, window_bounds = array<i64: 4, 16, 128>}]} {
    %c0 = arith.constant 0 : index
    %c0_0 = arith.constant 0 : index
    %c0_1 = arith.constant 0 : index
    %0 = vector.load %arg1[%c0, %c0_0, %c0_1] : memref<4x16x128xf32, #tpu.memory_space<vmem>>, vector<4x16x128xf32>
    %1 = vector.shape_cast %0 : vector<4x16x128xf32> to vector<64x128xf32>
    %c0_2 = arith.constant 0 : index
    %c0_3 = arith.constant 0 : index
    %c0_4 = arith.constant 0 : index
    %2 = vector.load %arg4[%c0_2, %c0_3, %c0_4] : memref<2x64x128xf32, #tpu.memory_space<vmem>>, vector<1x64x128xf32>
    %3 = vector.shape_cast %2 : vector<1x64x128xf32> to vector<64x128xf32>
    %c1 = arith.constant 1 : index
    %c0_5 = arith.constant 0 : index
    %c0_6 = arith.constant 0 : index
    %4 = vector.load %arg4[%c1, %c0_5, %c0_6] : memref<2x64x128xf32, #tpu.memory_space<vmem>>, vector<1x64x128xf32>
    %5 = vector.shape_cast %4 : vector<1x64x128xf32> to vector<64x128xf32>
    %c0_7 = arith.constant 0 : index
    %c0_8 = arith.constant 0 : index
    %6 = vector.load %arg5[%c0_7, %c0_8] : memref<16x128xf32, #tpu.memory_space<vmem>>, vector<16x128xf32>
    %7 = vector.extract_strided_slice %6 {offsets = [0, 0], sizes = [1, 128], strides = [1, 1]} : vector<16x128xf32> to vector<1x128xf32>
    %8 = vector.extract_strided_slice %6 {offsets = [1, 0], sizes = [1, 128], strides = [1, 1]} : vector<16x128xf32> to vector<1x128xf32>
    %9 = arith.truncf %1 : vector<64x128xf32> to vector<64x128xbf16>
    %c0_9 = arith.constant 0 : index
    %c0_10 = arith.constant 0 : index
    %10 = vector.load %arg2[%c0_9, %c0_10] : memref<128x384xbf16, #tpu.memory_space<vmem>>, vector<128x384xbf16>
    %cst = arith.constant dense<0.000000e+00> : vector<64x384xf32>
    %11 = tpu.matmul %9, %10, %cst {dimension_numbers = #tpu.dot_dimension_numbers<[1], [0], [0], [1], [0, 0, 1, 1], [], []>} : vector<64x128xbf16>, vector<128x384xbf16>, vector<64x384xf32> -> vector<64x384xf32>
    %12 = vector.extract_strided_slice %11 {offsets = [0, 0], sizes = [64, 128], strides = [1, 1]} : vector<64x384xf32> to vector<64x128xf32>
    %13 = vector.extract_strided_slice %11 {offsets = [0, 128], sizes = [64, 128], strides = [1, 1]} : vector<64x384xf32> to vector<64x128xf32>
    %14 = vector.extract_strided_slice %11 {offsets = [0, 256], sizes = [64, 128], strides = [1, 1]} : vector<64x384xf32> to vector<64x128xf32>
    %c1_i32 = arith.constant 1 : i32
    %15 = tpu.dynamic_rotate %12 by %c1_i32 dim 0 : vector<64x128xf32>, i32 -> vector<64x128xf32>
    %16 = arith.mulf %15, %3 : vector<64x128xf32>
    %c63_i32 = arith.constant 63 : i32
    %17 = tpu.dynamic_rotate %14 by %c63_i32 dim 0 : vector<64x128xf32>, i32 -> vector<64x128xf32>
    %18 = arith.mulf %17, %5 : vector<64x128xf32>
    %19 = arith.addf %16, %13 : vector<64x128xf32>
    %20 = arith.addf %19, %18 : vector<64x128xf32>
    %21 = vector.broadcast %7 : vector<1x128xf32> to vector<64x128xf32>
    %22 = arith.addf %20, %21 : vector<64x128xf32>
    %cst_11 = arith.constant 0.000000e+00 : f32
    %23 = vector.broadcast %cst_11 : f32 to vector<64x128xf32>
    %24 = arith.maximumf %22, %23 : vector<64x128xf32>
    %25 = arith.truncf %24 : vector<64x128xf32> to vector<64x128xbf16>
    %c0_12 = arith.constant 0 : index
    %c0_13 = arith.constant 0 : index
    %26 = vector.load %arg3[%c0_12, %c0_13] : memref<128x384xbf16, #tpu.memory_space<vmem>>, vector<128x384xbf16>
    %cst_14 = arith.constant dense<0.000000e+00> : vector<64x384xf32>
    %27 = tpu.matmul %25, %26, %cst_14 {dimension_numbers = #tpu.dot_dimension_numbers<[1], [0], [0], [1], [0, 0, 1, 1], [], []>} : vector<64x128xbf16>, vector<128x384xbf16>, vector<64x384xf32> -> vector<64x384xf32>
    %28 = vector.extract_strided_slice %27 {offsets = [0, 0], sizes = [64, 128], strides = [1, 1]} : vector<64x384xf32> to vector<64x128xf32>
    %29 = vector.extract_strided_slice %27 {offsets = [0, 128], sizes = [64, 128], strides = [1, 1]} : vector<64x384xf32> to vector<64x128xf32>
    %30 = vector.extract_strided_slice %27 {offsets = [0, 256], sizes = [64, 128], strides = [1, 1]} : vector<64x384xf32> to vector<64x128xf32>
    %c1_i32_15 = arith.constant 1 : i32
    %31 = tpu.dynamic_rotate %28 by %c1_i32_15 dim 0 : vector<64x128xf32>, i32 -> vector<64x128xf32>
    %32 = arith.mulf %31, %3 : vector<64x128xf32>
    %c63_i32_16 = arith.constant 63 : i32
    %33 = tpu.dynamic_rotate %30 by %c63_i32_16 dim 0 : vector<64x128xf32>, i32 -> vector<64x128xf32>
    %34 = arith.mulf %33, %5 : vector<64x128xf32>
    %35 = arith.addf %32, %29 : vector<64x128xf32>
    %36 = arith.addf %35, %34 : vector<64x128xf32>
    %37 = vector.broadcast %8 : vector<1x128xf32> to vector<64x128xf32>
    %38 = arith.addf %36, %37 : vector<64x128xf32>
    %39 = vector.shape_cast %38 : vector<64x128xf32> to vector<4x16x128xf32>
    %40 = vector.extract_strided_slice %39 {offsets = [0, 0, 0], sizes = [4, 8, 128], strides = [1, 1, 1]} : vector<4x16x128xf32> to vector<4x8x128xf32>
    %41 = vector.extract_strided_slice %39 {offsets = [0, 8, 0], sizes = [4, 8, 128], strides = [1, 1, 1]} : vector<4x16x128xf32> to vector<4x8x128xf32>
    %cst_17 = arith.constant dense<0.000000e+00> : vector<4x128xf32>
    %42 = vector.multi_reduction <add>, %40, %cst_17 [1] : vector<4x8x128xf32> to vector<4x128xf32>
    %cst_18 = arith.constant dense<0.000000e+00> : vector<4x128xf32>
    %43 = vector.multi_reduction <add>, %41, %cst_18 [1] : vector<4x8x128xf32> to vector<4x128xf32>
    %cst_19 = arith.constant dense<0xFF800000> : vector<4x128xf32>
    %44 = vector.multi_reduction <maximumf>, %40, %cst_19 [1] : vector<4x8x128xf32> to vector<4x128xf32>
    %cst_20 = arith.constant dense<0xFF800000> : vector<4x128xf32>
    %45 = vector.multi_reduction <maximumf>, %41, %cst_20 [1] : vector<4x8x128xf32> to vector<4x128xf32>
    %c8_i32 = arith.constant 8 : i32
    %46 = tpu.dynamic_rotate %42 by %c8_i32 dim 1 : vector<4x128xf32>, i32 -> vector<4x128xf32>
    %47 = arith.addf %42, %46 : vector<4x128xf32>
    %c16_i32 = arith.constant 16 : i32
    %48 = tpu.dynamic_rotate %47 by %c16_i32 dim 1 : vector<4x128xf32>, i32 -> vector<4x128xf32>
    %49 = arith.addf %47, %48 : vector<4x128xf32>
    %c32_i32 = arith.constant 32 : i32
    %50 = tpu.dynamic_rotate %49 by %c32_i32 dim 1 : vector<4x128xf32>, i32 -> vector<4x128xf32>
    %51 = arith.addf %49, %50 : vector<4x128xf32>
    %c64_i32 = arith.constant 64 : i32
    %52 = tpu.dynamic_rotate %51 by %c64_i32 dim 1 : vector<4x128xf32>, i32 -> vector<4x128xf32>
    %53 = arith.addf %51, %52 : vector<4x128xf32>
    %c8_i32_21 = arith.constant 8 : i32
    %54 = tpu.dynamic_rotate %43 by %c8_i32_21 dim 1 : vector<4x128xf32>, i32 -> vector<4x128xf32>
    %55 = arith.addf %43, %54 : vector<4x128xf32>
    %c16_i32_22 = arith.constant 16 : i32
    %56 = tpu.dynamic_rotate %55 by %c16_i32_22 dim 1 : vector<4x128xf32>, i32 -> vector<4x128xf32>
    %57 = arith.addf %55, %56 : vector<4x128xf32>
    %c32_i32_23 = arith.constant 32 : i32
    %58 = tpu.dynamic_rotate %57 by %c32_i32_23 dim 1 : vector<4x128xf32>, i32 -> vector<4x128xf32>
    %59 = arith.addf %57, %58 : vector<4x128xf32>
    %c64_i32_24 = arith.constant 64 : i32
    %60 = tpu.dynamic_rotate %59 by %c64_i32_24 dim 1 : vector<4x128xf32>, i32 -> vector<4x128xf32>
    %61 = arith.addf %59, %60 : vector<4x128xf32>
    %c8_i32_25 = arith.constant 8 : i32
    %62 = tpu.dynamic_rotate %44 by %c8_i32_25 dim 1 : vector<4x128xf32>, i32 -> vector<4x128xf32>
    %63 = arith.maximumf %44, %62 : vector<4x128xf32>
    %c16_i32_26 = arith.constant 16 : i32
    %64 = tpu.dynamic_rotate %63 by %c16_i32_26 dim 1 : vector<4x128xf32>, i32 -> vector<4x128xf32>
    %65 = arith.maximumf %63, %64 : vector<4x128xf32>
    %c32_i32_27 = arith.constant 32 : i32
    %66 = tpu.dynamic_rotate %65 by %c32_i32_27 dim 1 : vector<4x128xf32>, i32 -> vector<4x128xf32>
    %67 = arith.maximumf %65, %66 : vector<4x128xf32>
    %c64_i32_28 = arith.constant 64 : i32
    %68 = tpu.dynamic_rotate %67 by %c64_i32_28 dim 1 : vector<4x128xf32>, i32 -> vector<4x128xf32>
    %69 = arith.maximumf %67, %68 : vector<4x128xf32>
    %c8_i32_29 = arith.constant 8 : i32
    %70 = tpu.dynamic_rotate %45 by %c8_i32_29 dim 1 : vector<4x128xf32>, i32 -> vector<4x128xf32>
    %71 = arith.maximumf %45, %70 : vector<4x128xf32>
    %c16_i32_30 = arith.constant 16 : i32
    %72 = tpu.dynamic_rotate %71 by %c16_i32_30 dim 1 : vector<4x128xf32>, i32 -> vector<4x128xf32>
    %73 = arith.maximumf %71, %72 : vector<4x128xf32>
    %c32_i32_31 = arith.constant 32 : i32
    %74 = tpu.dynamic_rotate %73 by %c32_i32_31 dim 1 : vector<4x128xf32>, i32 -> vector<4x128xf32>
    %75 = arith.maximumf %73, %74 : vector<4x128xf32>
    %c64_i32_32 = arith.constant 64 : i32
    %76 = tpu.dynamic_rotate %75 by %c64_i32_32 dim 1 : vector<4x128xf32>, i32 -> vector<4x128xf32>
    %77 = arith.maximumf %75, %76 : vector<4x128xf32>
    %cst_33 = arith.constant 7.812500e-03 : f32
    %78 = vector.broadcast %cst_33 : f32 to vector<4x128xf32>
    %79 = arith.mulf %53, %78 : vector<4x128xf32>
    %cst_34 = arith.constant 7.812500e-03 : f32
    %80 = vector.broadcast %cst_34 : f32 to vector<4x128xf32>
    %81 = arith.mulf %61, %80 : vector<4x128xf32>
    %82 = arith.addf %53, %61 : vector<4x128xf32>
    %cst_35 = arith.constant 3.906250e-03 : f32
    %83 = vector.broadcast %cst_35 : f32 to vector<4x128xf32>
    %84 = arith.mulf %82, %83 : vector<4x128xf32>
    %85 = arith.maximumf %69, %77 : vector<4x128xf32>
    %86 = vector.extract_strided_slice %6 {offsets = [2, 0], sizes = [1, 128], strides = [1, 1]} : vector<16x128xf32> to vector<1x128xf32>
    %87 = vector.extract_strided_slice %6 {offsets = [3, 0], sizes = [1, 128], strides = [1, 1]} : vector<16x128xf32> to vector<1x128xf32>
    %88 = vector.extract_strided_slice %6 {offsets = [4, 0], sizes = [1, 128], strides = [1, 1]} : vector<16x128xf32> to vector<1x128xf32>
    %89 = vector.extract_strided_slice %6 {offsets = [5, 0], sizes = [1, 128], strides = [1, 1]} : vector<16x128xf32> to vector<1x128xf32>
    %90 = vector.extract_strided_slice %6 {offsets = [6, 0], sizes = [1, 128], strides = [1, 1]} : vector<16x128xf32> to vector<1x128xf32>
    %91 = vector.extract_strided_slice %6 {offsets = [7, 0], sizes = [1, 128], strides = [1, 1]} : vector<16x128xf32> to vector<1x128xf32>
    %92 = vector.extract_strided_slice %6 {offsets = [8, 0], sizes = [1, 128], strides = [1, 1]} : vector<16x128xf32> to vector<1x128xf32>
    %93 = vector.extract_strided_slice %6 {offsets = [9, 0], sizes = [1, 128], strides = [1, 1]} : vector<16x128xf32> to vector<1x128xf32>
    %94 = vector.extract_strided_slice %6 {offsets = [10, 0], sizes = [1, 128], strides = [1, 1]} : vector<16x128xf32> to vector<1x128xf32>
    %95 = vector.extract_strided_slice %6 {offsets = [11, 0], sizes = [1, 128], strides = [1, 1]} : vector<16x128xf32> to vector<1x128xf32>
    %96 = vector.extract_strided_slice %6 {offsets = [12, 0], sizes = [1, 128], strides = [1, 1]} : vector<16x128xf32> to vector<1x128xf32>
    %97 = vector.extract_strided_slice %6 {offsets = [13, 0], sizes = [1, 128], strides = [1, 1]} : vector<16x128xf32> to vector<1x128xf32>
    %98 = vector.extract_strided_slice %6 {offsets = [14, 0], sizes = [1, 128], strides = [1, 1]} : vector<16x128xf32> to vector<1x128xf32>
    %99 = vector.extract_strided_slice %6 {offsets = [15, 0], sizes = [1, 128], strides = [1, 1]} : vector<16x128xf32> to vector<1x128xf32>
    %100 = vector.broadcast %86 : vector<1x128xf32> to vector<4x128xf32>
    %101 = arith.mulf %85, %100 : vector<4x128xf32>
    %102 = vector.broadcast %87 : vector<1x128xf32> to vector<4x128xf32>
    %103 = arith.mulf %69, %102 : vector<4x128xf32>
    %104 = arith.addf %101, %103 : vector<4x128xf32>
    %105 = vector.broadcast %88 : vector<1x128xf32> to vector<4x128xf32>
    %106 = arith.mulf %69, %105 : vector<4x128xf32>
    %107 = arith.addf %104, %106 : vector<4x128xf32>
    %108 = vector.broadcast %89 : vector<1x128xf32> to vector<4x128xf32>
    %109 = arith.mulf %84, %108 : vector<4x128xf32>
    %110 = vector.broadcast %90 : vector<1x128xf32> to vector<4x128xf32>
    %111 = arith.mulf %79, %110 : vector<4x128xf32>
    %112 = arith.addf %109, %111 : vector<4x128xf32>
    %113 = vector.broadcast %91 : vector<1x128xf32> to vector<4x128xf32>
    %114 = arith.mulf %81, %113 : vector<4x128xf32>
    %115 = arith.addf %112, %114 : vector<4x128xf32>
    %116 = vector.broadcast %92 : vector<1x128xf32> to vector<4x128xf32>
    %117 = arith.mulf %84, %116 : vector<4x128xf32>
    %118 = vector.broadcast %93 : vector<1x128xf32> to vector<4x128xf32>
    %119 = arith.mulf %79, %118 : vector<4x128xf32>
    %120 = arith.addf %117, %119 : vector<4x128xf32>
    %121 = vector.broadcast %94 : vector<1x128xf32> to vector<4x128xf32>
    %122 = arith.mulf %81, %121 : vector<4x128xf32>
    %123 = arith.addf %120, %122 : vector<4x128xf32>
    %124 = vector.broadcast %98 : vector<1x128xf32> to vector<4x128xf32>
    %125 = arith.mulf %107, %124 : vector<4x128xf32>
    %126 = vector.broadcast %99 : vector<1x128xf32> to vector<4x128xf32>
    %127 = arith.addf %125, %126 : vector<4x128xf32>
    %128 = vector.broadcast %98 : vector<1x128xf32> to vector<4x128xf32>
    %129 = arith.mulf %115, %128 : vector<4x128xf32>
    %130 = vector.broadcast %99 : vector<1x128xf32> to vector<4x128xf32>
    %131 = arith.addf %129, %130 : vector<4x128xf32>
    %132 = vector.broadcast %98 : vector<1x128xf32> to vector<4x128xf32>
    %133 = arith.mulf %123, %132 : vector<4x128xf32>
    %134 = vector.broadcast %99 : vector<1x128xf32> to vector<4x128xf32>
    %135 = arith.addf %133, %134 : vector<4x128xf32>
    %136 = vector.broadcast %95 : vector<1x128xf32> to vector<4x128xf32>
    %137 = arith.mulf %127, %136 : vector<4x128xf32>
    %138 = vector.broadcast %96 : vector<1x128xf32> to vector<4x128xf32>
    %139 = arith.mulf %131, %138 : vector<4x128xf32>
    %140 = arith.addf %137, %139 : vector<4x128xf32>
    %141 = vector.broadcast %97 : vector<1x128xf32> to vector<4x128xf32>
    %142 = arith.mulf %135, %141 : vector<4x128xf32>
    %143 = arith.addf %140, %142 : vector<4x128xf32>
    %144 = vector.broadcast %98 : vector<1x128xf32> to vector<4x128xf32>
    %145 = arith.mulf %143, %144 : vector<4x128xf32>
    %146 = vector.broadcast %99 : vector<1x128xf32> to vector<4x128xf32>
    %147 = arith.addf %145, %146 : vector<4x128xf32>
    %148 = arith.negf %147 : vector<4x128xf32>
    %149 = math.exp %148 : vector<4x128xf32>
    %cst_36 = arith.constant 1.000000e+00 : f32
    %150 = vector.broadcast %cst_36 : f32 to vector<4x128xf32>
    %151 = arith.addf %150, %149 : vector<4x128xf32>
    %152 = arith.divf %150, %151 : vector<4x128xf32>
    %153 = vector.shape_cast %152 : vector<4x128xf32> to vector<4x1x128xf32>
    %154 = vector.broadcast %153 : vector<4x1x128xf32> to vector<4x16x128xf32>
    %155 = arith.mulf %39, %154 : vector<4x16x128xf32>
    %156 = arith.addf %155, %0 : vector<4x16x128xf32>
    %cst_37 = arith.constant 0.000000e+00 : f32
    %157 = vector.broadcast %cst_37 : f32 to vector<4x16x128xf32>
    %158 = arith.maximumf %156, %157 : vector<4x16x128xf32>
    %c0_38 = arith.constant 0 : index
    %c0_39 = arith.constant 0 : index
    %c0_40 = arith.constant 0 : index
    %159 = vector.load %arg6[%c0_38, %c0_39, %c0_40] : memref<4x16x128xf32, #tpu.memory_space<vmem>>, vector<4x16x128xf32>
    tpu.vector_store %arg6[%c0_38, %c0_39, %c0_40], %158 {strides = array<i32>} : memref<4x16x128xf32, #tpu.memory_space<vmem>>, vector<4x16x128xf32>,
    return
  }
  func.func @transform_0(%arg0: i32) -> (i32, i32, i32) {
    %c0_i32 = arith.constant 0 : i32
    %c0_i32_0 = arith.constant 0 : i32
    %c0_i32_1 = arith.constant 0 : i32
    return %arg0, %c0_i32, %c0_i32_0 : i32, i32, i32
  }
  func.func @transform_1(%arg0: i32) -> (i32, i32) {
    %c0_i32 = arith.constant 0 : i32
    %c0_i32_0 = arith.constant 0 : i32
    %c0_i32_1 = arith.constant 0 : i32
    return %c0_i32, %c0_i32_0 : i32, i32
  }
  func.func @transform_2(%arg0: i32) -> (i32, i32) {
    %c0_i32 = arith.constant 0 : i32
    %c0_i32_0 = arith.constant 0 : i32
    %c0_i32_1 = arith.constant 0 : i32
    return %c0_i32, %c0_i32_0 : i32, i32
  }
  func.func @transform_3(%arg0: i32) -> (i32, i32, i32) {
    %c0_i32 = arith.constant 0 : i32
    %c0_i32_0 = arith.constant 0 : i32
    %c0_i32_1 = arith.constant 0 : i32
    %c0_i32_2 = arith.constant 0 : i32
    return %c0_i32, %c0_i32_0, %c0_i32_1 : i32, i32, i32
  }
  func.func @transform_4(%arg0: i32) -> (i32, i32) {
    %c0_i32 = arith.constant 0 : i32
    %c0_i32_0 = arith.constant 0 : i32
    %c0_i32_1 = arith.constant 0 : i32
    return %c0_i32, %c0_i32_0 : i32, i32
  }
  func.func @transform_5(%arg0: i32) -> (i32, i32, i32) {
    %c0_i32 = arith.constant 0 : i32
    %c0_i32_0 = arith.constant 0 : i32
    %c0_i32_1 = arith.constant 0 : i32
    return %arg0, %c0_i32, %c0_i32_0 : i32, i32, i32
  }
}

</mosaic_0001>

<llo_original>
// kernel: tpu_custom_call.1
$region0: #{tpu_custom_call.1}
  #allocation0 [shape = 'u32[]', space=smem, size = 0x4, offset = 0x4, fixed_abs, tag = 'smem constant byte address 0x4 - core index']
  #allocation1 [shape = 'u32[144,128]{1,0:T(1,128)}', space=vmem, size = 0x12000, scoped, tag = 'internal scratch']
  %s0 = inlined_call_operand.hbm [shape: f32[8,16,128], index: 0, kind: input, shape index: {}]
  %s1 = inlined_call_operand.hbm [shape: bf16[128,384], index: 1, kind: input, shape index: {}]
  %s2 = inlined_call_operand.hbm [shape: bf16[128,384], index: 2, kind: input, shape index: {}]
  %s3 = inlined_call_operand.hbm [shape: f32[2,64,128], index: 3, kind: input, shape index: {}]
  %s4 = inlined_call_operand.hbm [shape: f32[16,128], index: 4, kind: input, shape index: {}]
  %s5 = inlined_call_operand.hbm [shape: f32[8,16,128], index: 5, kind: output, shape index: {}]
  %s6 = sld [smem:[#allocation0]]
  $region73: #{tpu_custom_call.1} parent=0
    _
  %s8 = ssub.s32 1, %s6
  %s9 = scalar_select 0, %s8, %s6
  $region1: #{tpu_custom_call.1} parent=0
    #allocation2 [shape = 'u8[65536]{0}', space=vmem, size = 0x10000, scoped, tag = 'input window, operand 0']
    #allocation3 [shape = 's32[2]{0}', space=sflag, size = 0x8, scoped, tag = 'scoped memory for tpu_custom_call.1']
    #allocation4 [shape = 's32[2]{0}', space=sflag, size = 0x8, scoped, tag = 'scoped memory for tpu_custom_call.1']
    #allocation5 [shape = 'u8[98304]{0}', space=vmem, size = 0x18000, scoped, tag = 'input window, operand 1, single buffered']
    #allocation6 [shape = 's32[1]{0}', space=sflag, size = 0x4, scoped, tag = 'scoped memory for tpu_custom_call.1']
    #allocation7 [shape = 'u8[98304]{0}', space=vmem, size = 0x18000, scoped, tag = 'input window, operand 2, single buffered']
    #allocation8 [shape = 'u8[65536]{0}', space=vmem, size = 0x10000, scoped, tag = 'input window, operand 3, single buffered']
    #allocation9 [shape = 's32[1]{0}', space=sflag, size = 0x4, scoped, tag = 'scoped memory for tpu_custom_call.1']
    #allocation10 [shape = 'u8[8192]{0}', space=vmem, size = 0x2000, scoped, tag = 'input window, operand 4, single buffered']
    #allocation11 [shape = 'u8[65536]{0}', space=vmem, size = 0x10000, scoped, tag = 'output window, operand 0']
    %10 = vsyncpa [#allocation3], 0
    %s11 = scalar_lea.sflag [#allocation3], 1
    %12 = vsyncpa %s11, 0
    %13 = vsyncpa [#allocation6], 0
    %14 = vsyncpa [#allocation9], 0
    %15 = vsyncpa [#allocation4], 0
    %s16 = scalar_lea.sflag [#allocation4], 1
    %17 = vsyncpa %s16, 0
    loop: start=0, step=1, limit=4
    $region2: #{tpu_custom_call.1} parent=1 // loop_pre_header
      _
    $region3: #{tpu_custom_call.1} parent=1 // loop_header
      %s19 = sphi 0, %s23
      %p20 = scmp.ge.s32.totalorder %s19, 4
      %s29 = sphi 0, %s31
      %s32 = sphi 0, %s29
      %s33 = sphi 0, %s32
      %s49 = sphi 0, %s33
      %s53 = sphi 0, %s53
      %s55 = sphi 0, %s53
      %s56 = sphi 0, %s55
      %s70 = sphi 0, %s56
      %s74 = sphi 0, %s74
      %s76 = sphi 0, %s74
      %s77 = sphi 0, %s76
      %s91 = sphi 0, %s77
      %s95 = sphi 0, %s95
      %s97 = sphi 0, %s95
      %s98 = sphi 0, %s97
      %s112 = sphi 0, %s98
      %s116 = sphi 0, %s116
      %s118 = sphi 0, %s116
      %s119 = sphi 0, %s118
      %s133 = sphi 0, %s119
      %s139 = sphi 0, %s141
      %s142 = sphi 0, %s139
      %s143 = sphi 0, %s142
      %s159 = sphi 0, %s143
    $region4: #{tpu_custom_call.1} parent=1 // loop_header_branch
      %22 = sbr.rel (%p20) target = $region8
    $region5: #{tpu_custom_call.1} parent=1 // loop_body
      %s24 = ssub.s32 %s19, 1
      %s25 = ssub.s32 %s19, 2
      %s26 = sadd.s32 %s19, 1
      %s27 = ssub.s32 %s19, %s26
      %p28 = scmp.eq.s32.totalorder %s27, 0
      %s30 = sadd.s32 %s29, 1
      %s31 = scalar_select %p28, %s29, %s30
      %p34 = pneg %p28
      %p35 = scmp.eq.s32.totalorder %s19, 1
      %p36 = por %p34, %p35
      %p37 = scmp.ne.s32.totalorder %s29, %s32
      %p38 = scmp.eq.s32.totalorder %s19, 0
      %p39 = por %p37, %p38
      %p40 = scmp.ne.s32.totalorder %s29, %s32
      %p41 = scmp.eq.s32.totalorder %s24, 1
      %p42 = por %p40, %p41
      %p43 = scmp.ne.s32.totalorder %s32, %s33
      %p44 = scmp.eq.s32.totalorder %s24, 0
      %p45 = por %p43, %p44
      %p46 = scmp.ne.s32.totalorder %s32, %s33
      %p47 = scmp.eq.s32.totalorder %s25, 1
      %p48 = por %p46, %p47
      %p50 = scmp.ne.s32.totalorder %s33, %s49
      %p51 = scmp.eq.s32.totalorder %s25, 0
      %p52 = por %p50, %p51
      %s54 = sadd.s32 %s53, 1
      %p57 = scmp.eq.s32.totalorder %s19, 1
      %p58 = scmp.ne.s32.totalorder %s53, %s55
      %p59 = scmp.eq.s32.totalorder %s19, 0
      %p60 = por %p58, %p59
      %p61 = scmp.ne.s32.totalorder %s53, %s55
      %p62 = scmp.eq.s32.totalorder %s24, 1
      %p63 = por %p61, %p62
      %p64 = scmp.ne.s32.totalorder %s55, %s56
      %p65 = scmp.eq.s32.totalorder %s24, 0
      %p66 = por %p64, %p65
      %p67 = scmp.ne.s32.totalorder %s55, %s56
      %p68 = scmp.eq.s32.totalorder %s25, 1
      %p69 = por %p67, %p68
      %p71 = scmp.ne.s32.totalorder %s56, %s70
      %p72 = scmp.eq.s32.totalorder %s25, 0
      %p73 = por %p71, %p72
      %s75 = sadd.s32 %s74, 1
      %p78 = scmp.eq.s32.totalorder %s19, 1
      %p79 = scmp.ne.s32.totalorder %s74, %s76
      %p80 = scmp.eq.s32.totalorder %s19, 0
      %p81 = por %p79, %p80
      %p82 = scmp.ne.s32.totalorder %s74, %s76
      %p83 = scmp.eq.s32.totalorder %s24, 1
      %p84 = por %p82, %p83
      %p85 = scmp.ne.s32.totalorder %s76, %s77
      %p86 = scmp.eq.s32.totalorder %s24, 0
      %p87 = por %p85, %p86
      %p88 = scmp.ne.s32.totalorder %s76, %s77
      %p89 = scmp.eq.s32.totalorder %s25, 1
      %p90 = por %p88, %p89
      %p92 = scmp.ne.s32.totalorder %s77, %s91
      %p93 = scmp.eq.s32.totalorder %s25, 0
      %p94 = por %p92, %p93
      %s96 = sadd.s32 %s95, 1
      %p99 = scmp.eq.s32.totalorder %s19, 1
      %p100 = scmp.ne.s32.totalorder %s95, %s97
      %p101 = scmp.eq.s32.totalorder %s19, 0
      %p102 = por %p100, %p101
      %p103 = scmp.ne.s32.totalorder %s95, %s97
      %p104 = scmp.eq.s32.totalorder %s24, 1
      %p105 = por %p103, %p104
      %p106 = scmp.ne.s32.totalorder %s97, %s98
      %p107 = scmp.eq.s32.totalorder %s24, 0
      %p108 = por %p106, %p107
      %p109 = scmp.ne.s32.totalorder %s97, %s98
      %p110 = scmp.eq.s32.totalorder %s25, 1
      %p111 = por %p109, %p110
      %p113 = scmp.ne.s32.totalorder %s98, %s112
      %p114 = scmp.eq.s32.totalorder %s25, 0
      %p115 = por %p113, %p114
      %s117 = sadd.s32 %s116, 1
      %p120 = scmp.eq.s32.totalorder %s19, 1
      %p121 = scmp.ne.s32.totalorder %s116, %s118
      %p122 = scmp.eq.s32.totalorder %s19, 0
      %p123 = por %p121, %p122
      %p124 = scmp.ne.s32.totalorder %s116, %s118
      %p125 = scmp.eq.s32.totalorder %s24, 1
      %p126 = por %p124, %p125
      %p127 = scmp.ne.s32.totalorder %s118, %s119
      %p128 = scmp.eq.s32.totalorder %s24, 0
      %p129 = por %p127, %p128
      %p130 = scmp.ne.s32.totalorder %s118, %s119
      %p131 = scmp.eq.s32.totalorder %s25, 1
      %p132 = por %p130, %p131
      %p134 = scmp.ne.s32.totalorder %s119, %s133
      %p135 = scmp.eq.s32.totalorder %s25, 0
      %p136 = por %p134, %p135
      %s137 = ssub.s32 %s19, %s26
      %p138 = scmp.eq.s32.totalorder %s137, 0
      %s140 = sadd.s32 %s139, 1
      %s141 = scalar_select %p138, %s139, %s140
      %p144 = pneg %p138
      %p145 = scmp.eq.s32.totalorder %s19, 1
      %p146 = por %p144, %p145
      %p147 = scmp.ne.s32.totalorder %s139, %s142
      %p148 = scmp.eq.s32.totalorder %s19, 0
      %p149 = por %p147, %p148
      %p150 = scmp.ne.s32.totalorder %s139, %s142
      %p151 = scmp.eq.s32.totalorder %s24, 1
      %p152 = por %p150, %p151
      %p153 = scmp.ne.s32.totalorder %s142, %s143
      %p154 = scmp.eq.s32.totalorder %s24, 0
      %p155 = por %p153, %p154
      %p156 = scmp.ne.s32.totalorder %s142, %s143
      %p157 = scmp.eq.s32.totalorder %s25, 1
      %p158 = por %p156, %p157
      %p160 = scmp.ne.s32.totalorder %s143, %s159
      %p161 = scmp.eq.s32.totalorder %s25, 0
      %p162 = por %p160, %p161
      %p163 = scmp.le.s32.totalorder 1, %s19
      %p164 = scmp.lt.s32.totalorder %s19, 3
      %p165 = pnand %p163, %p164
      %p166 = pneg %p165
      // Predicated region
      $region9: #{tpu_custom_call.1} parent=5 // pred_check
        _
      $region10: #{tpu_custom_call.1} parent=5 // pred_check_branch
        %168 = sbr.rel (%p165) target = $region12
      $region11: #{tpu_custom_call.1} parent=5 // pred_region
        %s169 = ssub.s32 %s19, 1
        // Predicated region
        $region13: #{tpu_custom_call.1} parent=11 // pred_check
          %p170 = pneg %p66
        $region14: #{tpu_custom_call.1} parent=11 // pred_check_branch
          %172 = sbr.rel (%p170) target = $region16
        $region15: #{tpu_custom_call.1} parent=11 // pred_region
          %s174 = ssub.s32 3072, 3072
          %175 = vsyncadd [#allocation6], %s174
          %s176 = sshll.u32 [#allocation5], 4
          %s177 = int_to_ptr.vmem [resolvable:$true] %s176
          %182 = dma.hbm_to_vmem [thread:$0]  %s1, 3072, %s177, [#allocation6], 192, 192, 12
        $region16: #{tpu_custom_call.1} parent=11 // pred_fallthru
          _
        // Predicated region
        $region17: #{tpu_custom_call.1} parent=11 // pred_check
          %p183 = pneg %p87
        $region18: #{tpu_custom_call.1} parent=11 // pred_check_branch
          %185 = sbr.rel (%p183) target = $region20
        $region19: #{tpu_custom_call.1} parent=11 // pred_region
          %s187 = ssub.s32 3072, 3072
          %188 = vsyncadd [#allocation6], %s187
          %s189 = sshll.u32 [#allocation7], 4
          %s190 = int_to_ptr.vmem [resolvable:$true] %s189
          %195 = dma.hbm_to_vmem [thread:$0]  %s2, 3072, %s190, [#allocation6], 192, 192, 12
        $region20: #{tpu_custom_call.1} parent=11 // pred_fallthru
          _
        // Predicated region
        $region21: #{tpu_custom_call.1} parent=11 // pred_check
          %p196 = pneg %p108
        $region22: #{tpu_custom_call.1} parent=11 // pred_check_branch
          %198 = sbr.rel (%p196) target = $region24
        $region23: #{tpu_custom_call.1} parent=11 // pred_region
          %s200 = ssub.s32 2048, 2048
          %201 = vsyncadd [#allocation9], %s200
          %s202 = sshll.u32 [#allocation8], 4
          %s203 = int_to_ptr.vmem [resolvable:$true] %s202
          %208 = dma.hbm_to_vmem [thread:$0]  %s3, 2048, %s203, [#allocation9], 128, 128, 8
        $region24: #{tpu_custom_call.1} parent=11 // pred_fallthru
          _
        // Predicated region
        $region25: #{tpu_custom_call.1} parent=11 // pred_check
          %p209 = pneg %p129
        $region26: #{tpu_custom_call.1} parent=11 // pred_check_branch
          %211 = sbr.rel (%p209) target = $region28
        $region27: #{tpu_custom_call.1} parent=11 // pred_region
          %s213 = ssub.s32 256, 256
          %214 = vsyncadd [#allocation9], %s213
          %s215 = sshll.u32 [#allocation10], 4
          %s216 = int_to_ptr.vmem [resolvable:$true] %s215
          %221 = dma.hbm_to_vmem [thread:$0]  %s4, 256, %s216, [#allocation9], 128, 128, 8
        $region28: #{tpu_custom_call.1} parent=11 // pred_fallthru
          _
      $region12: #{tpu_custom_call.1} parent=5 // pred_fallthru
        _
      %p222 = scmp.lt.s32.totalorder %s19, 2
      // Predicated region
      $region29: #{tpu_custom_call.1} parent=5 // pred_check
        %p223 = pneg %p222
      $region30: #{tpu_custom_call.1} parent=5 // pred_check_branch
        %225 = sbr.rel (%p223) target = $region32
      $region31: #{tpu_custom_call.1} parent=5 // pred_region
        // Predicated region
        $region33: #{tpu_custom_call.1} parent=31 // pred_check
          %p226 = pneg %p39
        $region34: #{tpu_custom_call.1} parent=31 // pred_check_branch
          %228 = sbr.rel (%p226) target = $region36
        $region35: #{tpu_custom_call.1} parent=31 // pred_region
          %s229 = sand.u32 %s29, 1
          %s230 = scalar_lea.sflag [#allocation3], %s229
          %s231 = sand.u32 %s29, 1
          %s232 = smul.addr %s231, 64
          %s233 = scalar_lea.vmem [#allocation2], %s232
          %s234 = smul.u32 4, %s19
          %s236 = ssub.s32 1024, 1024
          %237 = vsyncadd %s230, %s236
          %s238 = smul.addr %s234, 2
          %s239 = smul.addr %s238, 128
          %s240 = scalar_lea.hbm %s0, %s239
          %s241 = sshll.u32 %s233, 4
          %s242 = int_to_ptr.vmem [resolvable:$true] %s241
          %247 = dma.hbm_to_vmem [thread:$0]  %s240, 1024, %s242, %s230, 128, 128, 8
        $region36: #{tpu_custom_call.1} parent=31 // pred_fallthru
          _
      $region32: #{tpu_custom_call.1} parent=5 // pred_fallthru
        _
      %p248 = scmp.le.s32.totalorder 1, %s19
      %p249 = scmp.lt.s32.totalorder %s19, 3
      %p250 = pnand %p248, %p249
      %p251 = pneg %p250
      // Predicated region
      $region37: #{tpu_custom_call.1} parent=5 // pred_check
        _
      $region38: #{tpu_custom_call.1} parent=5 // pred_check_branch
        %253 = sbr.rel (%p250) target = $region40
      $region39: #{tpu_custom_call.1} parent=5 // pred_region
        %s254 = ssub.s32 %s19, 1
        %s255 = sand.u32 %s32, 1
        %s256 = scalar_lea.sflag [#allocation3], %s255
        %s257 = sand.u32 %s32, 1
        %s258 = smul.addr %s257, 64
        %s259 = scalar_lea.vmem [#allocation2], %s258
        // Predicated region
        $region41: #{tpu_custom_call.1} parent=39 // pred_check
          %p260 = pneg %p45
        $region42: #{tpu_custom_call.1} parent=39 // pred_check_branch
          %262 = sbr.rel (%p260) target = $region44
        $region43: #{tpu_custom_call.1} parent=39 // pred_region
          %263 = dma.done %s256, 1024
        $region44: #{tpu_custom_call.1} parent=39 // pred_fallthru
          _
        // Predicated region
        $region45: #{tpu_custom_call.1} parent=39 // pred_check
          %p264 = pneg %p66
        $region46: #{tpu_custom_call.1} parent=39 // pred_check_branch
          %266 = sbr.rel (%p264) target = $region48
        $region47: #{tpu_custom_call.1} parent=39 // pred_region
          %267 = dma.done [#allocation6], 3072
        $region48: #{tpu_custom_call.1} parent=39 // pred_fallthru
          _
        // Predicated region
        $region49: #{tpu_custom_call.1} parent=39 // pred_check
          %p268 = pneg %p87
        $region50: #{tpu_custom_call.1} parent=39 // pred_check_branch
          %270 = sbr.rel (%p268) target = $region52
        $region51: #{tpu_custom_call.1} parent=39 // pred_region
          %271 = dma.done [#allocation6], 3072
        $region52: #{tpu_custom_call.1} parent=39 // pred_fallthru
          _
        // Predicated region
        $region53: #{tpu_custom_call.1} parent=39 // pred_check
          %p272 = pneg %p108
        $region54: #{tpu_custom_call.1} parent=39 // pred_check_branch
          %274 = sbr.rel (%p272) target = $region56
        $region55: #{tpu_custom_call.1} parent=39 // pred_region
          %275 = dma.done [#allocation9], 2048
        $region56: #{tpu_custom_call.1} parent=39 // pred_fallthru
          _
        // Predicated region
        $region57: #{tpu_custom_call.1} parent=39 // pred_check
          %p276 = pneg %p129
        $region58: #{tpu_custom_call.1} parent=39 // pred_check_branch
          %278 = sbr.rel (%p276) target = $region60
        $region59: #{tpu_custom_call.1} parent=39 // pred_region
          %279 = dma.done [#allocation9], 256
        $region60: #{tpu_custom_call.1} parent=39 // pred_fallthru
          _
        %s280 = sand.u32 %s32, 1
        %s281 = scalar_lea.sflag [#allocation3], %s280
        %s282 = sand.u32 %s32, 1
        %s283 = smul.addr %s282, 64
        %s284 = scalar_lea.vmem [#allocation2], %s283
        %p285 = pneg %p45
        %p286 = pneg %p42
        %p287 = pneg %p66
        %p288 = pneg %p63
        %p289 = pneg %p87
        %p290 = pneg %p84
        %p291 = pneg %p108
        %p292 = pneg %p105
        %p293 = pneg %p129
        %p294 = pneg %p126
        %p295 = pneg %p155
        %p296 = pneg %p152
        %s297 = sand.u32 %s142, 1
        %s298 = scalar_lea.sflag [#allocation4], %s297
        %s299 = sand.u32 %s142, 1
        %s300 = smul.addr %s299, 64
        %s301 = scalar_lea.vmem [#allocation11], %s300
        %s302 = smul.u32 4, %s24
        %s303 = smul.u32 4, %s24
        %v305 = vld [vmem:[%s259] sm:$0xff]
        %v306 = vld [vmem:[%s259 + $0x8] sm:$0xff]
        %v307 = vld [vmem:[%s259 + $0x10] sm:$0xff]
        %v308 = vld [vmem:[%s259 + $0x18] sm:$0xff]
        %v309 = vld [vmem:[%s259 + $0x20] sm:$0xff]
        %v310 = vld [vmem:[%s259 + $0x28] sm:$0xff]
        %v311 = vld [vmem:[%s259 + $0x30] sm:$0xff]
        %v312 = vld [vmem:[%s259 + $0x38] sm:$0xff]
        %v313 = vld [vmem:[#allocation8] sm:$0xff]
        %v314 = vld [vmem:[#allocation8 + $0x8] sm:$0xff]
        %v315 = vld [vmem:[#allocation8 + $0x10] sm:$0xff]
        %v316 = vld [vmem:[#allocation8 + $0x18] sm:$0xff]
        %v317 = vld [vmem:[#allocation8 + $0x20] sm:$0xff]
        %v318 = vld [vmem:[#allocation8 + $0x28] sm:$0xff]
        %v319 = vld [vmem:[#allocation8 + $0x30] sm:$0xff]
        %v320 = vld [vmem:[#allocation8 + $0x38] sm:$0xff]
        %s321 = scalar_lea.vmem [#allocation8], 64
        %v322 = vld [vmem:[%s321] sm:$0xff]
        %v323 = vld [vmem:[%s321 + $0x8] sm:$0xff]
        %v324 = vld [vmem:[%s321 + $0x10] sm:$0xff]
        %v325 = vld [vmem:[%s321 + $0x18] sm:$0xff]
        %v326 = vld [vmem:[%s321 + $0x20] sm:$0xff]
        %v327 = vld [vmem:[%s321 + $0x28] sm:$0xff]
        %v328 = vld [vmem:[%s321 + $0x30] sm:$0xff]
        %v329 = vld [vmem:[%s321 + $0x38] sm:$0xff]
        %v330 = vld [vmem:[#allocation10] sm:$0xff]
        %v331 = vld [vmem:[#allocation10 + $0x8] sm:$0xff]
        %v332 = vpack.c.bf16 %v306, %v305
        %v333 = vpack.c.bf16 %v308, %v307
        %v334 = vpack.c.bf16 %v310, %v309
        %v335 = vpack.c.bf16 %v312, %v311
        %v336 = vld [vmem:[#allocation5] sm:$0xff]
        %v337 = vld [vmem:[#allocation5 + $0x8] sm:$0xf]
        %v338 = vld [vmem:[#allocation5 + $0xc] sm:$0xff]
        %v339 = vld [vmem:[#allocation5 + $0x14] sm:$0xf]
        %v340 = vld [vmem:[#allocation5 + $0x18] sm:$0xff]
        %v341 = vld [vmem:[#allocation5 + $0x20] sm:$0xf]
        %v342 = vld [vmem:[#allocation5 + $0x24] sm:$0xff]
        %v343 = vld [vmem:[#allocation5 + $0x2c] sm:$0xf]
        %v344 = vld [vmem:[#allocation5 + $0x30] sm:$0xff]
        %v345 = vld [vmem:[#allocation5 + $0x38] sm:$0xf]
        %v346 = vld [vmem:[#allocation5 + $0x3c] sm:$0xff]
        %v347 = vld [vmem:[#allocation5 + $0x44] sm:$0xf]
        %v348 = vld [vmem:[#allocation5 + $0x48] sm:$0xff]
        %v349 = vld [vmem:[#allocation5 + $0x50] sm:$0xf]
        %v350 = vld [vmem:[#allocation5 + $0x54] sm:$0xff]
        %v351 = vld [vmem:[#allocation5 + $0x5c] sm:$0xf]
        %v352 = vld [vmem:[#allocation5 + $0x60] sm:$0xff]
        %v353 = vld [vmem:[#allocation5 + $0x68] sm:$0xf]
        %v354 = vld [vmem:[#allocation5 + $0x6c] sm:$0xff]
        %v355 = vld [vmem:[#allocation5 + $0x74] sm:$0xf]
        %v356 = vld [vmem:[#allocation5 + $0x78] sm:$0xff]
        %v357 = vld [vmem:[#allocation5 + $0x80] sm:$0xf]
        %v358 = vld [vmem:[#allocation5 + $0x84] sm:$0xff]
        %v359 = vld [vmem:[#allocation5 + $0x8c] sm:$0xf]
        %v360 = vld [vmem:[#allocation5 + $0x90] sm:$0xff]
        %v361 = vld [vmem:[#allocation5 + $0x98] sm:$0xf]
        %v362 = vld [vmem:[#allocation5 + $0x9c] sm:$0xff]
        %v363 = vld [vmem:[#allocation5 + $0xa4] sm:$0xf]
        %v364 = vld [vmem:[#allocation5 + $0xa8] sm:$0xff]
        %v365 = vld [vmem:[#allocation5 + $0xb0] sm:$0xf]
        %v366 = vld [vmem:[#allocation5 + $0xb4] sm:$0xff]
        %v367 = vld [vmem:[#allocation5 + $0xbc] sm:$0xf]
        %v400 = vunpack.c.l.b16 %v336
        %v401 = vunpack.c.h.b16 %v336
        %v402 = vunpack.c.l.b16 %v337
        %v403 = vunpack.c.l.b16 %v338
        %v404 = vunpack.c.h.b16 %v338
        %v405 = vunpack.c.l.b16 %v339
        %v406 = vunpack.c.l.b16 %v340
        %v407 = vunpack.c.h.b16 %v340
        %v408 = vunpack.c.l.b16 %v341
        %v409 = vunpack.c.l.b16 %v342
        %v410 = vunpack.c.h.b16 %v342
        %v411 = vunpack.c.l.b16 %v343
        %v412 = vunpack.c.l.b16 %v344
        %v413 = vunpack.c.h.b16 %v344
        %v414 = vunpack.c.l.b16 %v345
        %v415 = vunpack.c.l.b16 %v346
        %v416 = vunpack.c.h.b16 %v346
        %v417 = vunpack.c.l.b16 %v347
        %v418 = vunpack.c.l.b16 %v348
        %v419 = vunpack.c.h.b16 %v348
        %v420 = vunpack.c.l.b16 %v349
        %v421 = vunpack.c.l.b16 %v350
        %v422 = vunpack.c.h.b16 %v350
        %v423 = vunpack.c.l.b16 %v351
        %v424 = vunpack.c.l.b16 %v352
        %v425 = vunpack.c.h.b16 %v352
        %v426 = vunpack.c.l.b16 %v353
        %v427 = vunpack.c.l.b16 %v354
        %v428 = vunpack.c.h.b16 %v354
        %v429 = vunpack.c.l.b16 %v355
        %v430 = vunpack.c.l.b16 %v356
        %v431 = vunpack.c.h.b16 %v356
        %v432 = vunpack.c.l.b16 %v357
        %v433 = vunpack.c.l.b16 %v358
        %v434 = vunpack.c.h.b16 %v358
        %v435 = vunpack.c.l.b16 %v359
        %v436 = vunpack.c.l.b16 %v360
        %v437 = vunpack.c.h.b16 %v360
        %v438 = vunpack.c.l.b16 %v361
        %v439 = vunpack.c.l.b16 %v362
        %v440 = vunpack.c.h.b16 %v362
        %v441 = vunpack.c.l.b16 %v363
        %v442 = vunpack.c.l.b16 %v364
        %v443 = vunpack.c.h.b16 %v364
        %v444 = vunpack.c.l.b16 %v365
        %v445 = vunpack.c.l.b16 %v366
        %v446 = vunpack.c.h.b16 %v366
        %v447 = vunpack.c.l.b16 %v367
        %v448 = vpack.c.b16 %v403, %v400
        %v449 = vpack.c.b16 %v404, %v401
        %v450 = vpack.c.b16 %v405, %v402
        %v451 = vpack.c.b16 %v409, %v406
        %v452 = vpack.c.b16 %v410, %v407
        %v453 = vpack.c.b16 %v411, %v408
        %v454 = vpack.c.b16 %v415, %v412
        %v455 = vpack.c.b16 %v416, %v413
        %v456 = vpack.c.b16 %v417, %v414
        %v457 = vpack.c.b16 %v421, %v418
        %v458 = vpack.c.b16 %v422, %v419
        %v459 = vpack.c.b16 %v423, %v420
        %v460 = vpack.c.b16 %v427, %v424
        %v461 = vpack.c.b16 %v428, %v425
        %v462 = vpack.c.b16 %v429, %v426
        %v463 = vpack.c.b16 %v433, %v430
        %v464 = vpack.c.b16 %v434, %v431
        %v465 = vpack.c.b16 %v435, %v432
        %v466 = vpack.c.b16 %v439, %v436
        %v467 = vpack.c.b16 %v440, %v437
        %v468 = vpack.c.b16 %v441, %v438
        %v469 = vpack.c.b16 %v445, %v442
        %v470 = vpack.c.b16 %v446, %v443
        %v471 = vpack.c.b16 %v447, %v444
        %496 = vmatprep.subr.bf16.mxu0 %v449
        %497 = vmatpush1.bf16.msra.mxu0 %v448
        %498 = vmatprep.subr.bf16.mxu0 %v452
        %499 = vmatpush1.bf16.msra.mxu0 %v451
        %500 = vmatprep.subr.bf16.mxu0 %v455
        %501 = vmatpush1.bf16.msra.mxu0 %v454
        %502 = vmatprep.subr.bf16.mxu0 %v458
        %503 = vmatpush1.bf16.msra.mxu0 %v457
        %504 = vmatprep.subr.bf16.mxu0 %v461
        %505 = vmatpush1.bf16.msra.mxu0 %v460
        %506 = vmatprep.subr.bf16.mxu0 %v464
        %507 = vmatpush1.bf16.msra.mxu0 %v463
        %508 = vmatprep.subr.bf16.mxu0 %v467
        %509 = vmatpush1.bf16.msra.mxu0 %v466
        %510 = vmatprep.subr.bf16.mxu0 %v470
        %511 = vmatpush1.bf16.msra.mxu0 %v469
        %512 = vmatprep.subr.bf16.mxu0 0
        %513 = vmatpush1.bf16.msra.mxu0 0
        %514 = vmatprep.subr.bf16.mxu0 0
        %515 = vmatpush1.bf16.msra.mxu0 0
        %516 = vmatprep.subr.bf16.mxu0 0
        %517 = vmatpush1.bf16.msra.mxu0 0
        %518 = vmatprep.subr.bf16.mxu0 0
        %519 = vmatpush1.bf16.msra.mxu0 0
        %520 = vmatprep.subr.bf16.mxu0 0
        %521 = vmatpush1.bf16.msra.mxu0 0
        %522 = vmatprep.subr.bf16.mxu0 0
        %523 = vmatpush1.bf16.msra.mxu0 0
        %524 = vmatprep.subr.bf16.mxu0 0
        %525 = vmatpush1.bf16.msra.mxu0 0
        %526 = vmatprep.subr.bf16.mxu0 0
        %527 = vmatpush1.bf16.msra.mxu0 0
        %528 = vmatprep.mubr.bf16.mxu0 0
        %529 = vmatmul.mubr.bf16.gmra.mrb[0].mxu0 %v332
        %v530 = vpop.f32.mrb[0].mxu0
        %v531 = vadd.f32 0.0, %v530
        %v532 = vpop.f32.mrb[0].mxu0
        %v533 = vadd.f32 0.0, %v532
        %v534 = vpop.f32.mrb[0].mxu0
        %v535 = vadd.f32 0.0, %v534
        %v536 = vpop.f32.mrb[0].mxu0
        %v537 = vadd.f32 0.0, %v536
        %538 = vmatprep.mubr.bf16.mxu0 0
        %539 = vmatmul.mubr.bf16.gmra.mrb[0].mxu0 %v333
        %v540 = vpop.f32.mrb[0].mxu0
        %v541 = vadd.f32 0.0, %v540
        %v542 = vpop.f32.mrb[0].mxu0
        %v543 = vadd.f32 0.0, %v542
        %v544 = vpop.f32.mrb[0].mxu0
        %v545 = vadd.f32 0.0, %v544
        %v546 = vpop.f32.mrb[0].mxu0
        %v547 = vadd.f32 0.0, %v546
        %548 = vmatprep.mubr.bf16.mxu0 0
        %549 = vmatmul.mubr.bf16.gmra.mrb[0].mxu0 %v334
        %v550 = vpop.f32.mrb[0].mxu0
        %v551 = vadd.f32 0.0, %v550
        %v552 = vpop.f32.mrb[0].mxu0
        %v553 = vadd.f32 0.0, %v552
        %v554 = vpop.f32.mrb[0].mxu0
        %v555 = vadd.f32 0.0, %v554
        %v556 = vpop.f32.mrb[0].mxu0
        %v557 = vadd.f32 0.0, %v556
        %558 = vmatprep.mubr.bf16.mxu0 0
        %559 = vmatmul.mubr.bf16.gmra.mrb[0].mxu0 %v335
        %v560 = vpop.f32.mrb[0].mxu0
        %v561 = vadd.f32 0.0, %v560
        %v562 = vpop.f32.mrb[0].mxu0
        %v563 = vadd.f32 0.0, %v562
        %v564 = vpop.f32.mrb[0].mxu0
        %v565 = vadd.f32 0.0, %v564
        %v566 = vpop.f32.mrb[0].mxu0
        %v567 = vadd.f32 0.0, %v566
        %568 = vdwg.mxu0
        %569 = vmatprep.subr.bf16.mxu0 0
        %570 = vmatpush1.bf16.msra.mxu0 %v450
        %571 = vmatprep.subr.bf16.mxu0 0
        %572 = vmatpush1.bf16.msra.mxu0 %v453
        %573 = vmatprep.subr.bf16.mxu0 0
        %574 = vmatpush1.bf16.msra.mxu0 %v456
        %575 = vmatprep.subr.bf16.mxu0 0
        %576 = vmatpush1.bf16.msra.mxu0 %v459
        %577 = vmatprep.subr.bf16.mxu0 0
        %578 = vmatpush1.bf16.msra.mxu0 %v462
        %579 = vmatprep.subr.bf16.mxu0 0
        %580 = vmatpush1.bf16.msra.mxu0 %v465
        %581 = vmatprep.subr.bf16.mxu0 0
        %582 = vmatpush1.bf16.msra.mxu0 %v468
        %583 = vmatprep.subr.bf16.mxu0 0
        %584 = vmatpush1.bf16.msra.mxu0 %v471
        %585 = vmatprep.subr.bf16.mxu0 0
        %586 = vmatpush1.bf16.msra.mxu0 0
        %587 = vmatprep.subr.bf16.mxu0 0
        %588 = vmatpush1.bf16.msra.mxu0 0
        %589 = vmatprep.subr.bf16.mxu0 0
        %590 = vmatpush1.bf16.msra.mxu0 0
        %591 = vmatprep.subr.bf16.mxu0 0
        %592 = vmatpush1.bf16.msra.mxu0 0
        %593 = vmatprep.subr.bf16.mxu0 0
        %594 = vmatpush1.bf16.msra.mxu0 0
        %595 = vmatprep.subr.bf16.mxu0 0
        %596 = vmatpush1.bf16.msra.mxu0 0
        %597 = vmatprep.subr.bf16.mxu0 0
        %598 = vmatpush1.bf16.msra.mxu0 0
        %599 = vmatprep.subr.bf16.mxu0 0
        %600 = vmatpush1.bf16.msra.mxu0 0
        %601 = vmatprep.mubr.bf16.mxu0 0
        %602 = vmatmul.mubr.bf16.gmra.mrb[0].mxu0 %v332
        %v603 = vpop.f32.mrb[0].mxu0
        %v604 = vadd.f32 0.0, %v603
        %v605 = vpop.f32.mrb[0].mxu0
        %v606 = vpop.f32.mrb[0].mxu0
        %v607 = vadd.f32 0.0, %v606
        %v608 = vpop.f32.mrb[0].mxu0
        %609 = vmatprep.mubr.bf16.mxu0 0
        %610 = vmatmul.mubr.bf16.gmra.mrb[0].mxu0 %v333
        %v611 = vpop.f32.mrb[0].mxu0
        %v612 = vadd.f32 0.0, %v611
        %v613 = vpop.f32.mrb[0].mxu0
        %v614 = vpop.f32.mrb[0].mxu0
        %v615 = vadd.f32 0.0, %v614
        %v616 = vpop.f32.mrb[0].mxu0
        %617 = vmatprep.mubr.bf16.mxu0 0
        %618 = vmatmul.mubr.bf16.gmra.mrb[0].mxu0 %v334
        %v619 = vpop.f32.mrb[0].mxu0
        %v620 = vadd.f32 0.0, %v619
        %v621 = vpop.f32.mrb[0].mxu0
        %v622 = vpop.f32.mrb[0].mxu0
        %v623 = vadd.f32 0.0, %v622
        %v624 = vpop.f32.mrb[0].mxu0
        %625 = vmatprep.mubr.bf16.mxu0 0
        %626 = vmatmul.mubr.bf16.gmra.mrb[0].mxu0 %v335
        %v627 = vpop.f32.mrb[0].mxu0
        %v628 = vadd.f32 0.0, %v627
        %v629 = vpop.f32.mrb[0].mxu0
        %v630 = vpop.f32.mrb[0].mxu0
        %v631 = vadd.f32 0.0, %v630
        %v632 = vpop.f32.mrb[0].mxu0
        %633 = vdwg.mxu0
        %v634 = vrot.slane %v531, 7
        %v635 = vrot.slane %v535, 7
        %v636 = vrot.slane %v541, 7
        %v637 = vrot.slane %v545, 7
        %v638 = vrot.slane %v551, 7
        %v639 = vrot.slane %v555, 7
        %v640 = vrot.slane %v561, 7
        %v641 = vrot.slane %v565, 7
        %v642 = vlaneseq
        %v643 = vshrl.u32 %v642, 7
        %vm644 = vcmp.lt.s32.totalorder %v643, 1
        %v645 = vsel %vm644, %v640, %v641
        %v646 = vsel %vm644, %v639, %v640
        %v647 = vsel %vm644, %v638, %v639
        %v648 = vsel %vm644, %v637, %v638
        %v649 = vsel %vm644, %v636, %v637
        %v650 = vsel %vm644, %v635, %v636
        %v651 = vsel %vm644, %v634, %v635
        %v652 = vsel %vm644, %v641, %v634
        %v653 = vmul.f32 %v652, %v313
        %v654 = vmul.f32 %v651, %v314
        %v655 = vmul.f32 %v650, %v315
        %v656 = vmul.f32 %v649, %v316
        %v657 = vmul.f32 %v648, %v317
        %v658 = vmul.f32 %v647, %v318
        %v659 = vmul.f32 %v646, %v319
        %v660 = vmul.f32 %v645, %v320
        %v661 = vrot.slane %v604, 1
        %v662 = vrot.slane %v607, 1
        %v663 = vrot.slane %v612, 1
        %v664 = vrot.slane %v615, 1
        %v665 = vrot.slane %v620, 1
        %v666 = vrot.slane %v623, 1
        %v667 = vrot.slane %v628, 1
        %v668 = vrot.slane %v631, 1
        %vm669 = vcmp.lt.s32.totalorder %v643, 7
        %v670 = vsel %vm669, %v667, %v668
        %v671 = vsel %vm669, %v666, %v667
        %v672 = vsel %vm669, %v665, %v666
        %v673 = vsel %vm669, %v664, %v665
        %v674 = vsel %vm669, %v663, %v664
        %v675 = vsel %vm669, %v662, %v663
        %v676 = vsel %vm669, %v661, %v662
        %v677 = vsel %vm669, %v668, %v661
        %v678 = vmul.f32 %v676, %v322
        %v679 = vmul.f32 %v675, %v323
        %v680 = vmul.f32 %v674, %v324
        %v681 = vmul.f32 %v673, %v325
        %v682 = vmul.f32 %v672, %v326
        %v683 = vmul.f32 %v671, %v327
        %v684 = vmul.f32 %v670, %v328
        %v685 = vmul.f32 %v677, %v329
        %v686 = vadd.f32 %v653, %v533
        %v687 = vadd.f32 %v654, %v537
        %v688 = vadd.f32 %v655, %v543
        %v689 = vadd.f32 %v656, %v547
        %v690 = vadd.f32 %v657, %v553
        %v691 = vadd.f32 %v658, %v557
        %v692 = vadd.f32 %v659, %v563
        %v693 = vadd.f32 %v660, %v567
        %v694 = vadd.f32 %v686, %v678
        %v695 = vadd.f32 %v687, %v679
        %v696 = vadd.f32 %v688, %v680
        %v697 = vadd.f32 %v689, %v681
        %v698 = vadd.f32 %v690, %v682
        %v699 = vadd.f32 %v691, %v683
        %v700 = vadd.f32 %v692, %v684
        %v701 = vadd.f32 %v693, %v685
        %v702 = vlaneseq
        %v703 = vshrl.u32 %v702, 7
        %v704 = vsub.s32 0, %v703
        %v705 = vrot.slane %v330, %v704
        %v706 = vadd.f32 %v694, %v705
        %v707 = vadd.f32 %v695, %v705
        %v708 = vadd.f32 %v696, %v705
        %v709 = vadd.f32 %v697, %v705
        %v710 = vadd.f32 %v698, %v705
        %v711 = vadd.f32 %v699, %v705
        %v712 = vadd.f32 %v700, %v705
        %v713 = vadd.f32 %v701, %v705
        %v714 = vmax.f32 %v706, 0.0
        %v715 = vmax.f32 %v707, 0.0
        %v716 = vmax.f32 %v708, 0.0
        %v717 = vmax.f32 %v709, 0.0
        %v718 = vmax.f32 %v710, 0.0
        %v719 = vmax.f32 %v711, 0.0
        %v720 = vmax.f32 %v712, 0.0
        %v721 = vmax.f32 %v713, 0.0
        %v722 = vpack.c.bf16 %v715, %v714
        %v723 = vpack.c.bf16 %v717, %v716
        %v724 = vpack.c.bf16 %v719, %v718
        %v725 = vpack.c.bf16 %v721, %v720
        %v726 = vld [vmem:[#allocation7] sm:$0xff]
        %v727 = vld [vmem:[#allocation7 + $0x8] sm:$0xf]
        %v728 = vld [vmem:[#allocation7 + $0xc] sm:$0xff]
        %v729 = vld [vmem:[#allocation7 + $0x14] sm:$0xf]
        %v730 = vld [vmem:[#allocation7 + $0x18] sm:$0xff]
        %v731 = vld [vmem:[#allocation7 + $0x20] sm:$0xf]
        %v732 = vld [vmem:[#allocation7 + $0x24] sm:$0xff]
        %v733 = vld [vmem:[#allocation7 + $0x2c] sm:$0xf]
        %v734 = vld [vmem:[#allocation7 + $0x30] sm:$0xff]
        %v735 = vld [vmem:[#allocation7 + $0x38] sm:$0xf]
        %v736 = vld [vmem:[#allocation7 + $0x3c] sm:$0xff]
        %v737 = vld [vmem:[#allocation7 + $0x44] sm:$0xf]
        %v738 = vld [vmem:[#allocation7 + $0x48] sm:$0xff]
        %v739 = vld [vmem:[#allocation7 + $0x50] sm:$0xf]
        %v740 = vld [vmem:[#allocation7 + $0x54] sm:$0xff]
        %v741 = vld [vmem:[#allocation7 + $0x5c] sm:$0xf]
        %v742 = vld [vmem:[#allocation7 + $0x60] sm:$0xff]
        %v743 = vld [vmem:[#allocation7 + $0x68] sm:$0xf]
        %v744 = vld [vmem:[#allocation7 + $0x6c] sm:$0xff]
        %v745 = vld [vmem:[#allocation7 + $0x74] sm:$0xf]
        %v746 = vld [vmem:[#allocation7 + $0x78] sm:$0xff]
        %v747 = vld [vmem:[#allocation7 + $0x80] sm:$0xf]
        %v748 = vld [vmem:[#allocation7 + $0x84] sm:$0xff]
        %v749 = vld [vmem:[#allocation7 + $0x8c] sm:$0xf]
        %v750 = vld [vmem:[#allocation7 + $0x90] sm:$0xff]
        %v751 = vld [vmem:[#allocation7 + $0x98] sm:$0xf]
        %v752 = vld [vmem:[#allocation7 + $0x9c] sm:$0xff]
        %v753 = vld [vmem:[#allocation7 + $0xa4] sm:$0xf]
        %v754 = vld [vmem:[#allocation7 + $0xa8] sm:$0xff]
        %v755 = vld [vmem:[#allocation7 + $0xb0] sm:$0xf]
        %v756 = vld [vmem:[#allocation7 + $0xb4] sm:$0xff]
        %v757 = vld [vmem:[#allocation7 + $0xbc] sm:$0xf]
        %v790 = vunpack.c.l.b16 %v726
        %v791 = vunpack.c.h.b16 %v726
        %v792 = vunpack.c.l.b16 %v727
        %v793 = vunpack.c.l.b16 %v728
        %v794 = vunpack.c.h.b16 %v728
        %v795 = vunpack.c.l.b16 %v729
        %v796 = vunpack.c.l.b16 %v730
        %v797 = vunpack.c.h.b16 %v730
        %v798 = vunpack.c.l.b16 %v731
        %v799 = vunpack.c.l.b16 %v732
        %v800 = vunpack.c.h.b16 %v732
        %v801 = vunpack.c.l.b16 %v733
        %v802 = vunpack.c.l.b16 %v734
        %v803 = vunpack.c.h.b16 %v734
        %v804 = vunpack.c.l.b16 %v735
        %v805 = vunpack.c.l.b16 %v736
        %v806 = vunpack.c.h.b16 %v736
        %v807 = vunpack.c.l.b16 %v737
        %v808 = vunpack.c.l.b16 %v738
        %v809 = vunpack.c.h.b16 %v738
        %v810 = vunpack.c.l.b16 %v739
        %v811 = vunpack.c.l.b16 %v740
        %v812 = vunpack.c.h.b16 %v740
        %v813 = vunpack.c.l.b16 %v741
        %v814 = vunpack.c.l.b16 %v742
        %v815 = vunpack.c.h.b16 %v742
        %v816 = vunpack.c.l.b16 %v743
        %v817 = vunpack.c.l.b16 %v744
        %v818 = vunpack.c.h.b16 %v744
        %v819 = vunpack.c.l.b16 %v745
        %v820 = vunpack.c.l.b16 %v746
        %v821 = vunpack.c.h.b16 %v746
        %v822 = vunpack.c.l.b16 %v747
        %v823 = vunpack.c.l.b16 %v748
        %v824 = vunpack.c.h.b16 %v748
        %v825 = vunpack.c.l.b16 %v749
        %v826 = vunpack.c.l.b16 %v750
        %v827 = vunpack.c.h.b16 %v750
        %v828 = vunpack.c.l.b16 %v751
        %v829 = vunpack.c.l.b16 %v752
        %v830 = vunpack.c.h.b16 %v752
        %v831 = vunpack.c.l.b16 %v753
        %v832 = vunpack.c.l.b16 %v754
        %v833 = vunpack.c.h.b16 %v754
        %v834 = vunpack.c.l.b16 %v755
        %v835 = vunpack.c.l.b16 %v756
        %v836 = vunpack.c.h.b16 %v756
        %v837 = vunpack.c.l.b16 %v757
        %v838 = vpack.c.b16 %v793, %v790
        %v839 = vpack.c.b16 %v794, %v791
        %v840 = vpack.c.b16 %v795, %v792
        %v841 = vpack.c.b16 %v799, %v796
        %v842 = vpack.c.b16 %v800, %v797
        %v843 = vpack.c.b16 %v801, %v798
        %v844 = vpack.c.b16 %v805, %v802
        %v845 = vpack.c.b16 %v806, %v803
        %v846 = vpack.c.b16 %v807, %v804
        %v847 = vpack.c.b16 %v811, %v808
        %v848 = vpack.c.b16 %v812, %v809
        %v849 = vpack.c.b16 %v813, %v810
        %v850 = vpack.c.b16 %v817, %v814
        %v851 = vpack.c.b16 %v818, %v815
        %v852 = vpack.c.b16 %v819, %v816
        %v853 = vpack.c.b16 %v823, %v820
        %v854 = vpack.c.b16 %v824, %v821
        %v855 = vpack.c.b16 %v825, %v822
        %v856 = vpack.c.b16 %v829, %v826
        %v857 = vpack.c.b16 %v830, %v827
        %v858 = vpack.c.b16 %v831, %v828
        %v859 = vpack.c.b16 %v835, %v832
        %v860 = vpack.c.b16 %v836, %v833
        %v861 = vpack.c.b16 %v837, %v834
        %886 = vmatprep.subr.bf16.mxu0 %v839
        %887 = vmatpush1.bf16.msra.mxu0 %v838
        %888 = vmatprep.subr.bf16.mxu0 %v842
        %889 = vmatpush1.bf16.msra.mxu0 %v841
        %890 = vmatprep.subr.bf16.mxu0 %v845
        %891 = vmatpush1.bf16.msra.mxu0 %v844
        %892 = vmatprep.subr.bf16.mxu0 %v848
        %893 = vmatpush1.bf16.msra.mxu0 %v847
        %894 = vmatprep.subr.bf16.mxu0 %v851
        %895 = vmatpush1.bf16.msra.mxu0 %v850
        %896 = vmatprep.subr.bf16.mxu0 %v854
        %897 = vmatpush1.bf16.msra.mxu0 %v853
        %898 = vmatprep.subr.bf16.mxu0 %v857
        %899 = vmatpush1.bf16.msra.mxu0 %v856
        %900 = vmatprep.subr.bf16.mxu0 %v860
        %901 = vmatpush1.bf16.msra.mxu0 %v859
        %902 = vmatprep.subr.bf16.mxu0 0
        %903 = vmatpush1.bf16.msra.mxu0 0
        %904 = vmatprep.subr.bf16.mxu0 0
        %905 = vmatpush1.bf16.msra.mxu0 0
        %906 = vmatprep.subr.bf16.mxu0 0
        %907 = vmatpush1.bf16.msra.mxu0 0
        %908 = vmatprep.subr.bf16.mxu0 0
        %909 = vmatpush1.bf16.msra.mxu0 0
        %910 = vmatprep.subr.bf16.mxu0 0
        %911 = vmatpush1.bf16.msra.mxu0 0
        %912 = vmatprep.subr.bf16.mxu0 0
        %913 = vmatpush1.bf16.msra.mxu0 0
        %914 = vmatprep.subr.bf16.mxu0 0
        %915 = vmatpush1.bf16.msra.mxu0 0
        %916 = vmatprep.subr.bf16.mxu0 0
        %917 = vmatpush1.bf16.msra.mxu0 0
        %918 = vmatprep.mubr.bf16.mxu0 0
        %919 = vmatmul.mubr.bf16.gmra.mrb[0].mxu0 %v722
        %v920 = vpop.f32.mrb[0].mxu0
        %v921 = vadd.f32 0.0, %v920
        %v922 = vpop.f32.mrb[0].mxu0
        %v923 = vadd.f32 0.0, %v922
        %v924 = vpop.f32.mrb[0].mxu0
        %v925 = vadd.f32 0.0, %v924
        %v926 = vpop.f32.mrb[0].mxu0
        %v927 = vadd.f32 0.0, %v926
        %928 = vmatprep.mubr.bf16.mxu0 0
        %929 = vmatmul.mubr.bf16.gmra.mrb[0].mxu0 %v723
        %v930 = vpop.f32.mrb[0].mxu0
        %v931 = vadd.f32 0.0, %v930
        %v932 = vpop.f32.mrb[0].mxu0
        %v933 = vadd.f32 0.0, %v932
        %v934 = vpop.f32.mrb[0].mxu0
        %v935 = vadd.f32 0.0, %v934
        %v936 = vpop.f32.mrb[0].mxu0
        %v937 = vadd.f32 0.0, %v936
        %938 = vmatprep.mubr.bf16.mxu0 0
        %939 = vmatmul.mubr.bf16.gmra.mrb[0].mxu0 %v724
        %v940 = vpop.f32.mrb[0].mxu0
        %v941 = vadd.f32 0.0, %v940
        %v942 = vpop.f32.mrb[0].mxu0
        %v943 = vadd.f32 0.0, %v942
        %v944 = vpop.f32.mrb[0].mxu0
        %v945 = vadd.f32 0.0, %v944
        %v946 = vpop.f32.mrb[0].mxu0
        %v947 = vadd.f32 0.0, %v946
        %948 = vmatprep.mubr.bf16.mxu0 0
        %949 = vmatmul.mubr.bf16.gmra.mrb[0].mxu0 %v725
        %v950 = vpop.f32.mrb[0].mxu0
        %v951 = vadd.f32 0.0, %v950
        %v952 = vpop.f32.mrb[0].mxu0
        %v953 = vadd.f32 0.0, %v952
        %v954 = vpop.f32.mrb[0].mxu0
        %v955 = vadd.f32 0.0, %v954
        %v956 = vpop.f32.mrb[0].mxu0
        %v957 = vadd.f32 0.0, %v956
        %958 = vdwg.mxu0
        %959 = vmatprep.subr.bf16.mxu0 0
        %960 = vmatpush1.bf16.msra.mxu0 %v840
        %961 = vmatprep.subr.bf16.mxu0 0
        %962 = vmatpush1.bf16.msra.mxu0 %v843
        %963 = vmatprep.subr.bf16.mxu0 0
        %964 = vmatpush1.bf16.msra.mxu0 %v846
        %965 = vmatprep.subr.bf16.mxu0 0
        %966 = vmatpush1.bf16.msra.mxu0 %v849
        %967 = vmatprep.subr.bf16.mxu0 0
        %968 = vmatpush1.bf16.msra.mxu0 %v852
        %969 = vmatprep.subr.bf16.mxu0 0
        %970 = vmatpush1.bf16.msra.mxu0 %v855
        %971 = vmatprep.subr.bf16.mxu0 0
        %972 = vmatpush1.bf16.msra.mxu0 %v858
        %973 = vmatprep.subr.bf16.mxu0 0
        %974 = vmatpush1.bf16.msra.mxu0 %v861
        %975 = vmatprep.subr.bf16.mxu0 0
        %976 = vmatpush1.bf16.msra.mxu0 0
        %977 = vmatprep.subr.bf16.mxu0 0
        %978 = vmatpush1.bf16.msra.mxu0 0
        %979 = vmatprep.subr.bf16.mxu0 0
        %980 = vmatpush1.bf16.msra.mxu0 0
        %981 = vmatprep.subr.bf16.mxu0 0
        %982 = vmatpush1.bf16.msra.mxu0 0
        %983 = vmatprep.subr.bf16.mxu0 0
        %984 = vmatpush1.bf16.msra.mxu0 0
        %985 = vmatprep.subr.bf16.mxu0 0
        %986 = vmatpush1.bf16.msra.mxu0 0
        %987 = vmatprep.subr.bf16.mxu0 0
        %988 = vmatpush1.bf16.msra.mxu0 0
        %989 = vmatprep.subr.bf16.mxu0 0
        %990 = vmatpush1.bf16.msra.mxu0 0
        %991 = vmatprep.mubr.bf16.mxu0 0
        %992 = vmatmul.mubr.bf16.gmra.mrb[0].mxu0 %v722
        %v993 = vpop.f32.mrb[0].mxu0
        %v994 = vadd.f32 0.0, %v993
        %v995 = vpop.f32.mrb[0].mxu0
        %v996 = vpop.f32.mrb[0].mxu0
        %v997 = vadd.f32 0.0, %v996
        %v998 = vpop.f32.mrb[0].mxu0
        %999 = vmatprep.mubr.bf16.mxu0 0
        %1000 = vmatmul.mubr.bf16.gmra.mrb[0].mxu0 %v723
        %v1001 = vpop.f32.mrb[0].mxu0
        %v1002 = vadd.f32 0.0, %v1001
        %v1003 = vpop.f32.mrb[0].mxu0
        %v1004 = vpop.f32.mrb[0].mxu0
        %v1005 = vadd.f32 0.0, %v1004
        %v1006 = vpop.f32.mrb[0].mxu0
        %1007 = vmatprep.mubr.bf16.mxu0 0
        %1008 = vmatmul.mubr.bf16.gmra.mrb[0].mxu0 %v724
        %v1009 = vpop.f32.mrb[0].mxu0
        %v1010 = vadd.f32 0.0, %v1009
        %v1011 = vpop.f32.mrb[0].mxu0
        %v1012 = vpop.f32.mrb[0].mxu0
        %v1013 = vadd.f32 0.0, %v1012
        %v1014 = vpop.f32.mrb[0].mxu0
        %1015 = vmatprep.mubr.bf16.mxu0 0
        %1016 = vmatmul.mubr.bf16.gmra.mrb[0].mxu0 %v725
        %v1017 = vpop.f32.mrb[0].mxu0
        %v1018 = vadd.f32 0.0, %v1017
        %v1019 = vpop.f32.mrb[0].mxu0
        %v1020 = vpop.f32.mrb[0].mxu0
        %v1021 = vadd.f32 0.0, %v1020
        %v1022 = vpop.f32.mrb[0].mxu0
        %1023 = vdwg.mxu0
        %v1024 = vrot.slane %v921, 7
        %v1025 = vrot.slane %v925, 7
        %v1026 = vrot.slane %v931, 7
        %v1027 = vrot.slane %v935, 7
        %v1028 = vrot.slane %v941, 7
        %v1029 = vrot.slane %v945, 7
        %v1030 = vrot.slane %v951, 7
        %v1031 = vrot.slane %v955, 7
        %v1032 = vsel %vm644, %v1030, %v1031
        %v1033 = vsel %vm644, %v1029, %v1030
        %v1034 = vsel %vm644, %v1028, %v1029
        %v1035 = vsel %vm644, %v1027, %v1028
        %v1036 = vsel %vm644, %v1026, %v1027
        %v1037 = vsel %vm644, %v1025, %v1026
        %v1038 = vsel %vm644, %v1024, %v1025
        %v1039 = vsel %vm644, %v1031, %v1024
        %v1040 = vmul.f32 %v1039, %v313
        %v1041 = vmul.f32 %v1038, %v314
        %v1042 = vmul.f32 %v1037, %v315
        %v1043 = vmul.f32 %v1036, %v316
        %v1044 = vmul.f32 %v1035, %v317
        %v1045 = vmul.f32 %v1034, %v318
        %v1046 = vmul.f32 %v1033, %v319
        %v1047 = vmul.f32 %v1032, %v320
        %v1048 = vrot.slane %v994, 1
        %v1049 = vrot.slane %v997, 1
        %v1050 = vrot.slane %v1002, 1
        %v1051 = vrot.slane %v1005, 1
        %v1052 = vrot.slane %v1010, 1
        %v1053 = vrot.slane %v1013, 1
        %v1054 = vrot.slane %v1018, 1
        %v1055 = vrot.slane %v1021, 1
        %v1056 = vsel %vm669, %v1054, %v1055
        %v1057 = vsel %vm669, %v1053, %v1054
        %v1058 = vsel %vm669, %v1052, %v1053
        %v1059 = vsel %vm669, %v1051, %v1052
        %v1060 = vsel %vm669, %v1050, %v1051
        %v1061 = vsel %vm669, %v1049, %v1050
        %v1062 = vsel %vm669, %v1048, %v1049
        %v1063 = vsel %vm669, %v1055, %v1048
        %v1064 = vmul.f32 %v1062, %v322
        %v1065 = vmul.f32 %v1061, %v323
        %v1066 = vmul.f32 %v1060, %v324
        %v1067 = vmul.f32 %v1059, %v325
        %v1068 = vmul.f32 %v1058, %v326
        %v1069 = vmul.f32 %v1057, %v327
        %v1070 = vmul.f32 %v1056, %v328
        %v1071 = vmul.f32 %v1063, %v329
        %v1072 = vadd.f32 %v1040, %v923
        %v1073 = vadd.f32 %v1041, %v927
        %v1074 = vadd.f32 %v1042, %v933
        %v1075 = vadd.f32 %v1043, %v937
        %v1076 = vadd.f32 %v1044, %v943
        %v1077 = vadd.f32 %v1045, %v947
        %v1078 = vadd.f32 %v1046, %v953
        %v1079 = vadd.f32 %v1047, %v957
        %v1080 = vadd.f32 %v1072, %v1064
        %v1081 = vadd.f32 %v1073, %v1065
        %v1082 = vadd.f32 %v1074, %v1066
        %v1083 = vadd.f32 %v1075, %v1067
        %v1084 = vadd.f32 %v1076, %v1068
        %v1085 = vadd.f32 %v1077, %v1069
        %v1086 = vadd.f32 %v1078, %v1070
        %v1087 = vadd.f32 %v1079, %v1071
        %v1088 = vlaneseq
        %v1089 = vshrl.u32 %v1088, 7
        %v1090 = vsub.s32 1, %v1089
        %v1091 = vrot.slane %v330, %v1090
        %v1092 = vadd.f32 %v1080, %v1091
        %v1093 = vadd.f32 %v1081, %v1091
        %v1094 = vadd.f32 %v1082, %v1091
        %v1095 = vadd.f32 %v1083, %v1091
        %v1096 = vadd.f32 %v1084, %v1091
        %v1097 = vadd.f32 %v1085, %v1091
        %v1098 = vadd.f32 %v1086, %v1091
        %v1099 = vadd.f32 %v1087, %v1091
        %v1100 = vrot.slane %v1092, 4
        %v1101 = vadd.f32 %v1092, %v1100
        %v1102 = vrot.slane %v1101, 2
        %v1103 = vadd.f32 %v1101, %v1102
        %v1104 = vrot.slane %v1103, 1
        %v1105 = vadd.f32 %v1103, %v1104
        %v1106 = vrot.slane %v1094, 4
        %v1107 = vadd.f32 %v1094, %v1106
        %v1108 = vrot.slane %v1107, 2
        %v1109 = vadd.f32 %v1107, %v1108
        %v1110 = vrot.slane %v1109, 1
        %v1111 = vadd.f32 %v1109, %v1110
        %v1112 = vrot.slane %v1096, 4
        %v1113 = vadd.f32 %v1096, %v1112
        %v1114 = vrot.slane %v1113, 2
        %v1115 = vadd.f32 %v1113, %v1114
        %v1116 = vrot.slane %v1115, 1
        %v1117 = vadd.f32 %v1115, %v1116
        %v1118 = vrot.slane %v1098, 4
        %v1119 = vadd.f32 %v1098, %v1118
        %v1120 = vrot.slane %v1119, 2
        %v1121 = vadd.f32 %v1119, %v1120
        %v1122 = vrot.slane %v1121, 1
        %v1123 = vadd.f32 %v1121, %v1122
        %v1124 = vrot.slane %v1093, 4
        %v1125 = vadd.f32 %v1093, %v1124
        %v1126 = vrot.slane %v1125, 2
        %v1127 = vadd.f32 %v1125, %v1126
        %v1128 = vrot.slane %v1127, 1
        %v1129 = vadd.f32 %v1127, %v1128
        %v1130 = vrot.slane %v1095, 4
        %v1131 = vadd.f32 %v1095, %v1130
        %v1132 = vrot.slane %v1131, 2
        %v1133 = vadd.f32 %v1131, %v1132
        %v1134 = vrot.slane %v1133, 1
        %v1135 = vadd.f32 %v1133, %v1134
        %v1136 = vrot.slane %v1097, 4
        %v1137 = vadd.f32 %v1097, %v1136
        %v1138 = vrot.slane %v1137, 2
        %v1139 = vadd.f32 %v1137, %v1138
        %v1140 = vrot.slane %v1139, 1
        %v1141 = vadd.f32 %v1139, %v1140
        %v1142 = vrot.slane %v1099, 4
        %v1143 = vadd.f32 %v1099, %v1142
        %v1144 = vrot.slane %v1143, 2
        %v1145 = vadd.f32 %v1143, %v1144
        %v1146 = vrot.slane %v1145, 1
        %v1147 = vadd.f32 %v1145, %v1146
        %v1148 = vrot.slane %v1092, 4
        %v1149 = vmax.f32 %v1092, %v1148
        %v1150 = vrot.slane %v1149, 2
        %v1151 = vmax.f32 %v1149, %v1150
        %v1152 = vrot.slane %v1151, 1
        %v1153 = vmax.f32 %v1151, %v1152
        %v1154 = vrot.slane %v1094, 4
        %v1155 = vmax.f32 %v1094, %v1154
        %v1156 = vrot.slane %v1155, 2
        %v1157 = vmax.f32 %v1155, %v1156
        %v1158 = vrot.slane %v1157, 1
        %v1159 = vmax.f32 %v1157, %v1158
        %v1160 = vrot.slane %v1096, 4
        %v1161 = vmax.f32 %v1096, %v1160
        %v1162 = vrot.slane %v1161, 2
        %v1163 = vmax.f32 %v1161, %v1162
        %v1164 = vrot.slane %v1163, 1
        %v1165 = vmax.f32 %v1163, %v1164
        %v1166 = vrot.slane %v1098, 4
        %v1167 = vmax.f32 %v1098, %v1166
        %v1168 = vrot.slane %v1167, 2
        %v1169 = vmax.f32 %v1167, %v1168
        %v1170 = vrot.slane %v1169, 1
        %v1171 = vmax.f32 %v1169, %v1170
        %v1172 = vrot.slane %v1093, 4
        %v1173 = vmax.f32 %v1093, %v1172
        %v1174 = vrot.slane %v1173, 2
        %v1175 = vmax.f32 %v1173, %v1174
        %v1176 = vrot.slane %v1175, 1
        %v1177 = vmax.f32 %v1175, %v1176
        %v1178 = vrot.slane %v1095, 4
        %v1179 = vmax.f32 %v1095, %v1178
        %v1180 = vrot.slane %v1179, 2
        %v1181 = vmax.f32 %v1179, %v1180
        %v1182 = vrot.slane %v1181, 1
        %v1183 = vmax.f32 %v1181, %v1182
        %v1184 = vrot.slane %v1097, 4
        %v1185 = vmax.f32 %v1097, %v1184
        %v1186 = vrot.slane %v1185, 2
        %v1187 = vmax.f32 %v1185, %v1186
        %v1188 = vrot.slane %v1187, 1
        %v1189 = vmax.f32 %v1187, %v1188
        %v1190 = vrot.slane %v1099, 4
        %v1191 = vmax.f32 %v1099, %v1190
        %v1192 = vrot.slane %v1191, 2
        %v1193 = vmax.f32 %v1191, %v1192
        %v1194 = vrot.slane %v1193, 1
        %v1195 = vmax.f32 %v1193, %v1194
        %vm1200 = vcmask 1041409
        %v1201 = vsel %vm1200, %v1111, %v1105
        %vm1202 = vcmask 1042434
        %v1203 = vsel %vm1202, %v1117, %v1201
        %vm1204 = vcmask 1043459
        %v1205 = vsel %vm1204, %v1123, %v1203
        %1207 = vrot.lane.b32.xlu0 %v1205, 8
        %v1208 = vpop.permute.xlu0 %1207
        %v1210 = vrot.slane %v1208, 1
        %v1211 = vrot.slane %v1208, 2
        %v1212 = vrot.slane %v1208, 3
        %v1217 = vadd.f32 %v1105, %v1208
        %v1218 = vadd.f32 %v1111, %v1210
        %v1219 = vadd.f32 %v1117, %v1211
        %v1220 = vadd.f32 %v1123, %v1212
        %v1225 = vrot.slane %v1218, 7
        %v1226 = vsel %vm1200, %v1225, %v1217
        %v1227 = vrot.slane %v1219, 6
        %v1228 = vsel %vm1202, %v1227, %v1226
        %v1229 = vrot.slane %v1220, 5
        %v1230 = vsel %vm1204, %v1229, %v1228
        %1232 = vrot.lane.b32.xlu0 %v1230, 16
        %v1233 = vpop.permute.xlu0 %1232
        %v1235 = vrot.slane %v1233, 1
        %v1236 = vrot.slane %v1233, 2
        %v1237 = vrot.slane %v1233, 3
        %v1242 = vadd.f32 %v1217, %v1233
        %v1243 = vadd.f32 %v1218, %v1235
        %v1244 = vadd.f32 %v1219, %v1236
        %v1245 = vadd.f32 %v1220, %v1237
        %v1250 = vrot.slane %v1243, 7
        %v1251 = vsel %vm1200, %v1250, %v1242
        %v1252 = vrot.slane %v1244, 6
        %v1253 = vsel %vm1202, %v1252, %v1251
        %v1254 = vrot.slane %v1245, 5
        %v1255 = vsel %vm1204, %v1254, %v1253
        %1257 = vrot.lane.b32.xlu0 %v1255, 32
        %v1258 = vpop.permute.xlu0 %1257
        %v1260 = vrot.slane %v1258, 1
        %v1261 = vrot.slane %v1258, 2
        %v1262 = vrot.slane %v1258, 3
        %v1267 = vadd.f32 %v1242, %v1258
        %v1268 = vadd.f32 %v1243, %v1260
        %v1269 = vadd.f32 %v1244, %v1261
        %v1270 = vadd.f32 %v1245, %v1262
        %v1275 = vrot.slane %v1268, 7
        %v1276 = vsel %vm1200, %v1275, %v1267
        %v1277 = vrot.slane %v1269, 6
        %v1278 = vsel %vm1202, %v1277, %v1276
        %v1279 = vrot.slane %v1270, 5
        %v1280 = vsel %vm1204, %v1279, %v1278
        %1282 = vrot.lane.b32.xlu0 %v1280, 64
        %v1283 = vpop.permute.xlu0 %1282
        %v1285 = vrot.slane %v1283, 1
        %v1286 = vrot.slane %v1283, 2
        %v1287 = vrot.slane %v1283, 3
        %v1292 = vadd.f32 %v1267, %v1283
        %v1293 = vadd.f32 %v1268, %v1285
        %v1294 = vadd.f32 %v1269, %v1286
        %v1295 = vadd.f32 %v1270, %v1287
        %v1300 = vsel %vm1200, %v1135, %v1129
        %v1301 = vsel %vm1202, %v1141, %v1300
        %v1302 = vsel %vm1204, %v1147, %v1301
        %1304 = vrot.lane.b32.xlu0 %v1302, 8
        %v1305 = vpop.permute.xlu0 %1304
        %v1307 = vrot.slane %v1305, 1
        %v1308 = vrot.slane %v1305, 2
        %v1309 = vrot.slane %v1305, 3
        %v1314 = vadd.f32 %v1129, %v1305
        %v1315 = vadd.f32 %v1135, %v1307
        %v1316 = vadd.f32 %v1141, %v1308
        %v1317 = vadd.f32 %v1147, %v1309
        %v1322 = vrot.slane %v1315, 7
        %v1323 = vsel %vm1200, %v1322, %v1314
        %v1324 = vrot.slane %v1316, 6
        %v1325 = vsel %vm1202, %v1324, %v1323
        %v1326 = vrot.slane %v1317, 5
        %v1327 = vsel %vm1204, %v1326, %v1325
        %1329 = vrot.lane.b32.xlu0 %v1327, 16
        %v1330 = vpop.permute.xlu0 %1329
        %v1332 = vrot.slane %v1330, 1
        %v1333 = vrot.slane %v1330, 2
        %v1334 = vrot.slane %v1330, 3
        %v1339 = vadd.f32 %v1314, %v1330
        %v1340 = vadd.f32 %v1315, %v1332
        %v1341 = vadd.f32 %v1316, %v1333
        %v1342 = vadd.f32 %v1317, %v1334
        %v1347 = vrot.slane %v1340, 7
        %v1348 = vsel %vm1200, %v1347, %v1339
        %v1349 = vrot.slane %v1341, 6
        %v1350 = vsel %vm1202, %v1349, %v1348
        %v1351 = vrot.slane %v1342, 5
        %v1352 = vsel %vm1204, %v1351, %v1350
        %1354 = vrot.lane.b32.xlu0 %v1352, 32
        %v1355 = vpop.permute.xlu0 %1354
        %v1357 = vrot.slane %v1355, 1
        %v1358 = vrot.slane %v1355, 2
        %v1359 = vrot.slane %v1355, 3
        %v1364 = vadd.f32 %v1339, %v1355
        %v1365 = vadd.f32 %v1340, %v1357
        %v1366 = vadd.f32 %v1341, %v1358
        %v1367 = vadd.f32 %v1342, %v1359
        %v1372 = vrot.slane %v1365, 7
        %v1373 = vsel %vm1200, %v1372, %v1364
        %v1374 = vrot.slane %v1366, 6
        %v1375 = vsel %vm1202, %v1374, %v1373
        %v1376 = vrot.slane %v1367, 5
        %v1377 = vsel %vm1204, %v1376, %v1375
        %1379 = vrot.lane.b32.xlu0 %v1377, 64
        %v1380 = vpop.permute.xlu0 %1379
        %v1382 = vrot.slane %v1380, 1
        %v1383 = vrot.slane %v1380, 2
        %v1384 = vrot.slane %v1380, 3
        %v1389 = vadd.f32 %v1364, %v1380
        %v1390 = vadd.f32 %v1365, %v1382
        %v1391 = vadd.f32 %v1366, %v1383
        %v1392 = vadd.f32 %v1367, %v1384
        %v1397 = vsel %vm1200, %v1159, %v1153
        %v1398 = vsel %vm1202, %v1165, %v1397
        %v1399 = vsel %vm1204, %v1171, %v1398
        %1401 = vrot.lane.b32.xlu0 %v1399, 8
        %v1402 = vpop.permute.xlu0 %1401
        %v1404 = vrot.slane %v1402, 1
        %v1405 = vrot.slane %v1402, 2
        %v1406 = vrot.slane %v1402, 3
        %v1411 = vmax.f32 %v1153, %v1402
        %v1412 = vmax.f32 %v1159, %v1404
        %v1413 = vmax.f32 %v1165, %v1405
        %v1414 = vmax.f32 %v1171, %v1406
        %v1419 = vrot.slane %v1412, 7
        %v1420 = vsel %vm1200, %v1419, %v1411
        %v1421 = vrot.slane %v1413, 6
        %v1422 = vsel %vm1202, %v1421, %v1420
        %v1423 = vrot.slane %v1414, 5
        %v1424 = vsel %vm1204, %v1423, %v1422
        %1426 = vrot.lane.b32.xlu0 %v1424, 16
        %v1427 = vpop.permute.xlu0 %1426
        %v1429 = vrot.slane %v1427, 1
        %v1430 = vrot.slane %v1427, 2
        %v1431 = vrot.slane %v1427, 3
        %v1436 = vmax.f32 %v1411, %v1427
        %v1437 = vmax.f32 %v1412, %v1429
        %v1438 = vmax.f32 %v1413, %v1430
        %v1439 = vmax.f32 %v1414, %v1431
        %v1444 = vrot.slane %v1437, 7
        %v1445 = vsel %vm1200, %v1444, %v1436
        %v1446 = vrot.slane %v1438, 6
        %v1447 = vsel %vm1202, %v1446, %v1445
        %v1448 = vrot.slane %v1439, 5
        %v1449 = vsel %vm1204, %v1448, %v1447
        %1451 = vrot.lane.b32.xlu0 %v1449, 32
        %v1452 = vpop.permute.xlu0 %1451
        %v1454 = vrot.slane %v1452, 1
        %v1455 = vrot.slane %v1452, 2
        %v1456 = vrot.slane %v1452, 3
        %v1461 = vmax.f32 %v1436, %v1452
        %v1462 = vmax.f32 %v1437, %v1454
        %v1463 = vmax.f32 %v1438, %v1455
        %v1464 = vmax.f32 %v1439, %v1456
        %v1469 = vrot.slane %v1462, 7
        %v1470 = vsel %vm1200, %v1469, %v1461
        %v1471 = vrot.slane %v1463, 6
        %v1472 = vsel %vm1202, %v1471, %v1470
        %v1473 = vrot.slane %v1464, 5
        %v1474 = vsel %vm1204, %v1473, %v1472
        %1476 = vrot.lane.b32.xlu0 %v1474, 64
        %v1477 = vpop.permute.xlu0 %1476
        %v1479 = vrot.slane %v1477, 1
        %v1480 = vrot.slane %v1477, 2
        %v1481 = vrot.slane %v1477, 3
        %v1486 = vmax.f32 %v1461, %v1477
        %v1487 = vmax.f32 %v1462, %v1479
        %v1488 = vmax.f32 %v1463, %v1480
        %v1489 = vmax.f32 %v1464, %v1481
        %v1494 = vsel %vm1200, %v1183, %v1177
        %v1495 = vsel %vm1202, %v1189, %v1494
        %v1496 = vsel %vm1204, %v1195, %v1495
        %1498 = vrot.lane.b32.xlu0 %v1496, 8
        %v1499 = vpop.permute.xlu0 %1498
        %v1501 = vrot.slane %v1499, 1
        %v1502 = vrot.slane %v1499, 2
        %v1503 = vrot.slane %v1499, 3
        %v1508 = vmax.f32 %v1177, %v1499
        %v1509 = vmax.f32 %v1183, %v1501
        %v1510 = vmax.f32 %v1189, %v1502
        %v1511 = vmax.f32 %v1195, %v1503
        %v1516 = vrot.slane %v1509, 7
        %v1517 = vsel %vm1200, %v1516, %v1508
        %v1518 = vrot.slane %v1510, 6
        %v1519 = vsel %vm1202, %v1518, %v1517
        %v1520 = vrot.slane %v1511, 5
        %v1521 = vsel %vm1204, %v1520, %v1519
        %1523 = vrot.lane.b32.xlu0 %v1521, 16
        %v1524 = vpop.permute.xlu0 %1523
        %v1526 = vrot.slane %v1524, 1
        %v1527 = vrot.slane %v1524, 2
        %v1528 = vrot.slane %v1524, 3
        %v1533 = vmax.f32 %v1508, %v1524
        %v1534 = vmax.f32 %v1509, %v1526
        %v1535 = vmax.f32 %v1510, %v1527
        %v1536 = vmax.f32 %v1511, %v1528
        %v1541 = vrot.slane %v1534, 7
        %v1542 = vsel %vm1200, %v1541, %v1533
        %v1543 = vrot.slane %v1535, 6
        %v1544 = vsel %vm1202, %v1543, %v1542
        %v1545 = vrot.slane %v1536, 5
        %v1546 = vsel %vm1204, %v1545, %v1544
        %1548 = vrot.lane.b32.xlu0 %v1546, 32
        %v1549 = vpop.permute.xlu0 %1548
        %v1551 = vrot.slane %v1549, 1
        %v1552 = vrot.slane %v1549, 2
        %v1553 = vrot.slane %v1549, 3
        %v1558 = vmax.f32 %v1533, %v1549
        %v1559 = vmax.f32 %v1534, %v1551
        %v1560 = vmax.f32 %v1535, %v1552
        %v1561 = vmax.f32 %v1536, %v1553
        %v1566 = vrot.slane %v1559, 7
        %v1567 = vsel %vm1200, %v1566, %v1558
        %v1568 = vrot.slane %v1560, 6
        %v1569 = vsel %vm1202, %v1568, %v1567
        %v1570 = vrot.slane %v1561, 5
        %v1571 = vsel %vm1204, %v1570, %v1569
        %1573 = vrot.lane.b32.xlu0 %v1571, 64
        %v1574 = vpop.permute.xlu0 %1573
        %v1576 = vrot.slane %v1574, 1
        %v1577 = vrot.slane %v1574, 2
        %v1578 = vrot.slane %v1574, 3
        %v1583 = vmax.f32 %v1558, %v1574
        %v1584 = vmax.f32 %v1559, %v1576
        %v1585 = vmax.f32 %v1560, %v1577
        %v1586 = vmax.f32 %v1561, %v1578
        %v1587 = vmul.f32 %v1292, 0.0078125
        %v1588 = vmul.f32 %v1293, 0.0078125
        %v1589 = vmul.f32 %v1294, 0.0078125
        %v1590 = vmul.f32 %v1295, 0.0078125
        %v1591 = vmul.f32 %v1389, 0.0078125
        %v1592 = vmul.f32 %v1390, 0.0078125
        %v1593 = vmul.f32 %v1391, 0.0078125
        %v1594 = vmul.f32 %v1392, 0.0078125
        %v1595 = vadd.f32 %v1292, %v1389
        %v1596 = vadd.f32 %v1293, %v1390
        %v1597 = vadd.f32 %v1294, %v1391
        %v1598 = vadd.f32 %v1295, %v1392
        %v1599 = vmul.f32 %v1595, 0.00390625
        %v1600 = vmul.f32 %v1596, 0.00390625
        %v1601 = vmul.f32 %v1597, 0.00390625
        %v1602 = vmul.f32 %v1598, 0.00390625
        %v1603 = vmax.f32 %v1486, %v1583
        %v1604 = vmax.f32 %v1487, %v1584
        %v1605 = vmax.f32 %v1488, %v1585
        %v1606 = vmax.f32 %v1489, %v1586
        %v1607 = vlaneseq
        %v1608 = vshrl.u32 %v1607, 7
        %v1609 = vsub.s32 2, %v1608
        %v1610 = vrot.slane %v330, %v1609
        %v1611 = vmul.f32 %v1603, %v1610
        %v1612 = vmul.f32 %v1604, %v1610
        %v1613 = vmul.f32 %v1605, %v1610
        %v1614 = vmul.f32 %v1606, %v1610
        %v1615 = vlaneseq
        %v1616 = vshrl.u32 %v1615, 7
        %v1617 = vsub.s32 3, %v1616
        %v1618 = vrot.slane %v330, %v1617
        %v1619 = vmul.f32 %v1486, %v1618
        %v1620 = vmul.f32 %v1487, %v1618
        %v1621 = vmul.f32 %v1488, %v1618
        %v1622 = vmul.f32 %v1489, %v1618
        %v1623 = vadd.f32 %v1611, %v1619
        %v1624 = vadd.f32 %v1612, %v1620
        %v1625 = vadd.f32 %v1613, %v1621
        %v1626 = vadd.f32 %v1614, %v1622
        %v1627 = vlaneseq
        %v1628 = vshrl.u32 %v1627, 7
        %v1629 = vsub.s32 4, %v1628
        %v1630 = vrot.slane %v330, %v1629
        %v1631 = vmul.f32 %v1486, %v1630
        %v1632 = vmul.f32 %v1487, %v1630
        %v1633 = vmul.f32 %v1488, %v1630
        %v1634 = vmul.f32 %v1489, %v1630
        %v1635 = vadd.f32 %v1623, %v1631
        %v1636 = vadd.f32 %v1624, %v1632
        %v1637 = vadd.f32 %v1625, %v1633
        %v1638 = vadd.f32 %v1626, %v1634
        %v1639 = vlaneseq
        %v1640 = vshrl.u32 %v1639, 7
        %v1641 = vsub.s32 5, %v1640
        %v1642 = vrot.slane %v330, %v1641
        %v1643 = vmul.f32 %v1599, %v1642
        %v1644 = vmul.f32 %v1600, %v1642
        %v1645 = vmul.f32 %v1601, %v1642
        %v1646 = vmul.f32 %v1602, %v1642
        %v1647 = vlaneseq
        %v1648 = vshrl.u32 %v1647, 7
        %v1649 = vsub.s32 6, %v1648
        %v1650 = vrot.slane %v330, %v1649
        %v1651 = vmul.f32 %v1587, %v1650
        %v1652 = vmul.f32 %v1588, %v1650
        %v1653 = vmul.f32 %v1589, %v1650
        %v1654 = vmul.f32 %v1590, %v1650
        %v1655 = vadd.f32 %v1643, %v1651
        %v1656 = vadd.f32 %v1644, %v1652
        %v1657 = vadd.f32 %v1645, %v1653
        %v1658 = vadd.f32 %v1646, %v1654
        %v1659 = vlaneseq
        %v1660 = vshrl.u32 %v1659, 7
        %v1661 = vsub.s32 7, %v1660
        %v1662 = vrot.slane %v330, %v1661
        %v1663 = vmul.f32 %v1591, %v1662
        %v1664 = vmul.f32 %v1592, %v1662
        %v1665 = vmul.f32 %v1593, %v1662
        %v1666 = vmul.f32 %v1594, %v1662
        %v1667 = vadd.f32 %v1655, %v1663
        %v1668 = vadd.f32 %v1656, %v1664
        %v1669 = vadd.f32 %v1657, %v1665
        %v1670 = vadd.f32 %v1658, %v1666
        %v1671 = vlaneseq
        %v1672 = vshrl.u32 %v1671, 7
        %v1673 = vsub.s32 0, %v1672
        %v1674 = vrot.slane %v331, %v1673
        %v1675 = vmul.f32 %v1599, %v1674
        %v1676 = vmul.f32 %v1600, %v1674
        %v1677 = vmul.f32 %v1601, %v1674
        %v1678 = vmul.f32 %v1602, %v1674
        %v1679 = vlaneseq
        %v1680 = vshrl.u32 %v1679, 7
        %v1681 = vsub.s32 1, %v1680
        %v1682 = vrot.slane %v331, %v1681
        %v1683 = vmul.f32 %v1587, %v1682
        %v1684 = vmul.f32 %v1588, %v1682
        %v1685 = vmul.f32 %v1589, %v1682
        %v1686 = vmul.f32 %v1590, %v1682
        %v1687 = vadd.f32 %v1675, %v1683
        %v1688 = vadd.f32 %v1676, %v1684
        %v1689 = vadd.f32 %v1677, %v1685
        %v1690 = vadd.f32 %v1678, %v1686
        %v1691 = vlaneseq
        %v1692 = vshrl.u32 %v1691, 7
        %v1693 = vsub.s32 2, %v1692
        %v1694 = vrot.slane %v331, %v1693
        %v1695 = vmul.f32 %v1591, %v1694
        %v1696 = vmul.f32 %v1592, %v1694
        %v1697 = vmul.f32 %v1593, %v1694
        %v1698 = vmul.f32 %v1594, %v1694
        %v1699 = vadd.f32 %v1687, %v1695
        %v1700 = vadd.f32 %v1688, %v1696
        %v1701 = vadd.f32 %v1689, %v1697
        %v1702 = vadd.f32 %v1690, %v1698
        %v1703 = vlaneseq
        %v1704 = vshrl.u32 %v1703, 7
        %v1705 = vsub.s32 6, %v1704
        %v1706 = vrot.slane %v331, %v1705
        %v1707 = vmul.f32 %v1635, %v1706
        %v1708 = vmul.f32 %v1636, %v1706
        %v1709 = vmul.f32 %v1637, %v1706
        %v1710 = vmul.f32 %v1638, %v1706
        %v1711 = vlaneseq
        %v1712 = vshrl.u32 %v1711, 7
        %v1713 = vsub.s32 7, %v1712
        %v1714 = vrot.slane %v331, %v1713
        %v1715 = vadd.f32 %v1707, %v1714
        %v1716 = vadd.f32 %v1708, %v1714
        %v1717 = vadd.f32 %v1709, %v1714
        %v1718 = vadd.f32 %v1710, %v1714
        %v1719 = vmul.f32 %v1667, %v1706
        %v1720 = vmul.f32 %v1668, %v1706
        %v1721 = vmul.f32 %v1669, %v1706
        %v1722 = vmul.f32 %v1670, %v1706
        %v1723 = vadd.f32 %v1719, %v1714
        %v1724 = vadd.f32 %v1720, %v1714
        %v1725 = vadd.f32 %v1721, %v1714
        %v1726 = vadd.f32 %v1722, %v1714
        %v1727 = vmul.f32 %v1699, %v1706
        %v1728 = vmul.f32 %v1700, %v1706
        %v1729 = vmul.f32 %v1701, %v1706
        %v1730 = vmul.f32 %v1702, %v1706
        %v1731 = vadd.f32 %v1727, %v1714
        %v1732 = vadd.f32 %v1728, %v1714
        %v1733 = vadd.f32 %v1729, %v1714
        %v1734 = vadd.f32 %v1730, %v1714
        %v1735 = vlaneseq
        %v1736 = vshrl.u32 %v1735, 7
        %v1737 = vsub.s32 3, %v1736
        %v1738 = vrot.slane %v331, %v1737
        %v1739 = vmul.f32 %v1715, %v1738
        %v1740 = vmul.f32 %v1716, %v1738
        %v1741 = vmul.f32 %v1717, %v1738
        %v1742 = vmul.f32 %v1718, %v1738
        %v1743 = vlaneseq
        %v1744 = vshrl.u32 %v1743, 7
        %v1745 = vsub.s32 4, %v1744
        %v1746 = vrot.slane %v331, %v1745
        %v1747 = vmul.f32 %v1723, %v1746
        %v1748 = vmul.f32 %v1724, %v1746
        %v1749 = vmul.f32 %v1725, %v1746
        %v1750 = vmul.f32 %v1726, %v1746
        %v1751 = vadd.f32 %v1739, %v1747
        %v1752 = vadd.f32 %v1740, %v1748
        %v1753 = vadd.f32 %v1741, %v1749
        %v1754 = vadd.f32 %v1742, %v1750
        %v1755 = vlaneseq
        %v1756 = vshrl.u32 %v1755, 7
        %v1757 = vsub.s32 5, %v1756
        %v1758 = vrot.slane %v331, %v1757
        %v1759 = vmul.f32 %v1731, %v1758
        %v1760 = vmul.f32 %v1732, %v1758
        %v1761 = vmul.f32 %v1733, %v1758
        %v1762 = vmul.f32 %v1734, %v1758
        %v1763 = vadd.f32 %v1751, %v1759
        %v1764 = vadd.f32 %v1752, %v1760
        %v1765 = vadd.f32 %v1753, %v1761
        %v1766 = vadd.f32 %v1754, %v1762
        %v1767 = vmul.f32 %v1763, %v1706
        %v1768 = vmul.f32 %v1764, %v1706
        %v1769 = vmul.f32 %v1765, %v1706
        %v1770 = vmul.f32 %v1766, %v1706
        %v1771 = vadd.f32 %v1767, %v1714
        %v1772 = vadd.f32 %v1768, %v1714
        %v1773 = vadd.f32 %v1769, %v1714
        %v1774 = vadd.f32 %v1770, %v1714
        %v1775 = vxor.u32 %v1771, 2147483648
        %v1776 = vxor.u32 %v1772, 2147483648
        %v1777 = vxor.u32 %v1773, 2147483648
        %v1778 = vxor.u32 %v1774, 2147483648
        %v1779 = vmul.f32 %v1775, 1.442695
        %v1780 = vpow.pop %v1779
        %v1781 = vmul.f32 %v1776, 1.442695
        %v1782 = vpow.pop %v1781
        %v1783 = vmul.f32 %v1777, 1.442695
        %v1784 = vpow.pop %v1783
        %v1785 = vmul.f32 %v1778, 1.442695
        %v1786 = vpow.pop %v1785
        %v1787 = vadd.f32 %v1780, 1.0
        %v1788 = vadd.f32 %v1782, 1.0
        %v1789 = vadd.f32 %v1784, 1.0
        %v1790 = vadd.f32 %v1786, 1.0
        %v1791 = vrcp.pop %v1787
        %v1792 = vmul.f32 1.0, %v1791
        %v1793 = vrcp.pop %v1788
        %v1794 = vmul.f32 1.0, %v1793
        %v1795 = vrcp.pop %v1789
        %v1796 = vmul.f32 1.0, %v1795
        %v1797 = vrcp.pop %v1790
        %v1798 = vmul.f32 1.0, %v1797
        %v1799 = vlaneseq
        %v1800 = vshrl.u32 %v1799, 7
        %v1801 = vsub.s32 0, %v1800
        %v1802 = vrot.slane %v1792, %v1801
        %v1803 = vlaneseq
        %v1804 = vshrl.u32 %v1803, 7
        %v1805 = vsub.s32 0, %v1804
        %v1806 = vrot.slane %v1794, %v1805
        %v1807 = vlaneseq
        %v1808 = vshrl.u32 %v1807, 7
        %v1809 = vsub.s32 0, %v1808
        %v1810 = vrot.slane %v1796, %v1809
        %v1811 = vlaneseq
        %v1812 = vshrl.u32 %v1811, 7
        %v1813 = vsub.s32 0, %v1812
        %v1814 = vrot.slane %v1798, %v1813
        %v1815 = vmul.f32 %v1092, %v1802
        %v1816 = vmul.f32 %v1093, %v1802
        %v1817 = vmul.f32 %v1094, %v1806
        %v1818 = vmul.f32 %v1095, %v1806
        %v1819 = vmul.f32 %v1096, %v1810
        %v1820 = vmul.f32 %v1097, %v1810
        %v1821 = vmul.f32 %v1098, %v1814
        %v1822 = vmul.f32 %v1099, %v1814
        %v1823 = vadd.f32 %v1815, %v305
        %v1824 = vadd.f32 %v1816, %v306
        %v1825 = vadd.f32 %v1817, %v307
        %v1826 = vadd.f32 %v1818, %v308
        %v1827 = vadd.f32 %v1819, %v309
        %v1828 = vadd.f32 %v1820, %v310
        %v1829 = vadd.f32 %v1821, %v311
        %v1830 = vadd.f32 %v1822, %v312
        %v1831 = vmax.f32 %v1823, 0.0
        %v1832 = vmax.f32 %v1824, 0.0
        %v1833 = vmax.f32 %v1825, 0.0
        %v1834 = vmax.f32 %v1826, 0.0
        %v1835 = vmax.f32 %v1827, 0.0
        %v1836 = vmax.f32 %v1828, 0.0
        %v1837 = vmax.f32 %v1829, 0.0
        %v1838 = vmax.f32 %v1830, 0.0
        %1839 = vst [vmem:[%s301] sm:$0xff] %v1831
        %1840 = vst [vmem:[%s301 + $0x8] sm:$0xff] %v1832
        %1841 = vst [vmem:[%s301 + $0x10] sm:$0xff] %v1833
        %1842 = vst [vmem:[%s301 + $0x18] sm:$0xff] %v1834
        %1843 = vst [vmem:[%s301 + $0x20] sm:$0xff] %v1835
        %1844 = vst [vmem:[%s301 + $0x28] sm:$0xff] %v1836
        %1845 = vst [vmem:[%s301 + $0x30] sm:$0xff] %v1837
        %1846 = vst [vmem:[%s301 + $0x38] sm:$0xff] %v1838
        %s1847 = sand.u32 %s142, 1
        %s1848 = scalar_lea.sflag [#allocation4], %s1847
        %s1849 = sand.u32 %s142, 1
        %s1850 = smul.addr %s1849, 64
        %s1851 = scalar_lea.vmem [#allocation11], %s1850
        // Predicated region
        $region61: #{tpu_custom_call.1} parent=39 // pred_check
          %p1852 = pneg %p152
        $region62: #{tpu_custom_call.1} parent=39 // pred_check_branch
          %1854 = sbr.rel (%p1852) target = $region64
        $region63: #{tpu_custom_call.1} parent=39 // pred_region
          %s1855 = smul.u32 4, %s24
          %s1857 = ssub.s32 1024, 1024
          %1858 = vsyncadd %s1848, %s1857
          %s1859 = smul.addr %s1855, 2
          %s1860 = smul.addr %s1859, 128
          %s1861 = scalar_lea.hbm %s5, %s1860
          %s1862 = sshll.u32 %s1851, 4
          %s1863 = int_to_ptr.vmem [resolvable:$true] %s1862
          %1868 = dma.vmem_to_hbm [thread:$0]  %s1863, 1024, %s1861, %s1848, 128, 128, 8
        $region64: #{tpu_custom_call.1} parent=39 // pred_fallthru
          _
      $region40: #{tpu_custom_call.1} parent=5 // pred_fallthru
        _
      %p1869 = scmp.le.s32.totalorder 2, %s19
      // Predicated region
      $region65: #{tpu_custom_call.1} parent=5 // pred_check
        %p1870 = pneg %p1869
      $region66: #{tpu_custom_call.1} parent=5 // pred_check_branch
        %1872 = sbr.rel (%p1870) target = $region68
      $region67: #{tpu_custom_call.1} parent=5 // pred_region
        %s1873 = ssub.s32 %s19, 2
        // Predicated region
        $region69: #{tpu_custom_call.1} parent=67 // pred_check
          %p1874 = pneg %p158
        $region70: #{tpu_custom_call.1} parent=67 // pred_check_branch
          %1876 = sbr.rel (%p1874) target = $region72
        $region71: #{tpu_custom_call.1} parent=67 // pred_region
          %s1877 = sand.u32 %s143, 1
          %s1878 = scalar_lea.sflag [#allocation4], %s1877
          %s1879 = sand.u32 %s143, 1
          %s1880 = smul.addr %s1879, 64
          %s1881 = scalar_lea.vmem [#allocation11], %s1880
          %1882 = dma.done %s1878, 1024
        $region72: #{tpu_custom_call.1} parent=67 // pred_fallthru
          _
      $region68: #{tpu_custom_call.1} parent=5 // pred_fallthru
        _
    $region6: #{tpu_custom_call.1} parent=1 // loop_footer
      %s23 = sadd.s32 1, %s19
    $region7: #{tpu_custom_call.1} parent=1 // loop_footer_branch
      %18 = sbr.rel target = $region3
    $region8: #{tpu_custom_call.1} parent=1 // loop_exit
      _
    %1883 = vsyncpa [#allocation3], 1
    %s1884 = scalar_lea.sflag [#allocation3], 1
    %1885 = vsyncpa %s1884, 1
    %1886 = vsyncpa [#allocation6], 1
    %1887 = vsyncpa [#allocation9], 1
    %1888 = vsyncpa [#allocation4], 1
    %s1889 = scalar_lea.sflag [#allocation4], 1
    %1890 = vsyncpa %s1889, 1

</llo_original>
